<compile_context>
chip_gen: v6e
topology: v6e:2x2x1
jax: 0.10.0
libtpu: 0.0.40
codegen_flags: <defaults>
</compile_context>

<pallas_src>
import functools

import jax
import jax.numpy as jnp
from jax import lax
from jax.experimental import pallas as pl
from jax.experimental.pallas import tpu as pltpu

# Deterministic GP hyperparameters (replace the learned raw_lengthscale /
# raw_outputscale / raw_noise of the gpytorch model).
LENGTHSCALE = 1.0
OUTPUTSCALE = 1.0
NOISE = 0.1
TRAIN_PERIOD_FRACTION = 0.2

# Whole-array blocks resident in VMEM (single grid step; shapes are tiny).
_VMEM_SPEC = pl.BlockSpec(memory_space=pltpu.MemorySpace.VMEM)


# --------------------------------------------------------------------------
# Fully fused kernel: covariance + Gauss-Jordan solve + posterior prediction.
# --------------------------------------------------------------------------
def _gp_fused_kernel(xtr_ref, xqt_ref, y_ref, out_ref, *,
                     lengthscale, outputscale, noise):
    """xtr_ref: (B, ntr, D) train points (rows).
    xqt_ref:   (B, D, q)   query points pre-transposed, q = ntr + nte,
               first ntr query columns == the train points themselves.
    y_ref:     (B, ntr, 1) train targets as a column.
    out_ref:   (B, 3, q)   [mean ; mean - 2*std ; mean + 2*std] slab.
    """
    bsz, ntr, d = xtr_ref.shape
    q = xqt_ref.shape[2]
    inv_2ls2 = 0.5 / (lengthscale * lengthscale)
    total_var = outputscale + noise          # RBF prior diag + likelihood noise

    # Constants hoisted out of the batch loop (built once).
    row_nn = lax.broadcasted_iota(jnp.int32, (ntr, ntr), 0)
    col_nn = lax.broadcasted_iota(jnp.int32, (ntr, ntr), 1)
    noise_eye = jnp.where(row_nn == col_nn, jnp.float32(noise), jnp.float32(0.0))
    row_ids = lax.broadcasted_iota(jnp.int32, (ntr, 1), 0)
    slab_row = lax.broadcasted_iota(jnp.int32, (3, 1), 0)
    # Output slab rows: [mean, mean - 2*std, mean + 2*std] via sign broadcast.
    slab_sign = jnp.where(slab_row == 0, 0.0,
                          jnp.where(slab_row == 1, -1.0, 1.0)).astype(jnp.float32)

    for b in range(bsz):                     # B tiny -> static unroll
        xt = xtr_ref[b]                      # (ntr, d)
        xq_t = xqt_ref[b]                    # (d, q)   already transposed
        y_col = y_ref[b]                     # (ntr, 1)

        # Pairwise squared distances, train rows vs all query columns.
        # Pure VPU broadcast-subtract: column slice minus row slice, no .T.
        d2 = jnp.zeros((ntr, q), jnp.float32)
        for k in range(d):                   # D tiny -> static unroll
            dk = xt[:, k:k + 1] - xq_t[k:k + 1, :]
            d2 = d2 + dk * dk
        kstar = outputscale * jnp.exp(-d2 * inv_2ls2)      # (ntr, q), one EUP pass

        # Noisy train covariance: the first ntr query columns ARE rbf(x_tr, x_tr),
        # so K is a slice + diagonal add (no duplicate distance/exp pass).
        kmat = kstar[:, :ntr] + noise_eye                  # (ntr, ntr)

        # Unrolled in-kernel Gauss-Jordan on the augmented system
        #   [K | y | Kstar] -> [I | K^-1 y | K^-1 Kstar]
        # SPD + noise jitter on the diagonal -> no pivoting needed.
        yy = y_col
        ss = kstar
        for j in range(ntr):                 # ntr tiny -> static unroll
            inv_piv = 1.0 / kmat[j:j + 1, j:j + 1]         # (1, 1)
            rowk = kmat[j:j + 1, :] * inv_piv              # (1, ntr)
            rowy = yy[j:j + 1, :] * inv_piv                # (1, 1)
            rows = ss[j:j + 1, :] * inv_piv                # (1, q)
            is_j = row_ids == j                            # (ntr, 1)
            colj = kmat[:, j:j + 1]                        # (ntr, 1)
            kmat = jnp.where(is_j, rowk, kmat - colj * rowk)
            yy = jnp.where(is_j, rowy, yy - colj * rowy)
            ss = jnp.where(is_j, rows, ss - colj * rows)

        alpha = yy                           # (ntr, 1) = K^-1 y
        aa = ss                              # (ntr, q) = K^-1 Kstar

        # Posterior mean / variance as lane-dense rows; VPU mul + sublane
        # reduce instead of (8x8) MXU pushes (sub-1% MXU utilization anyway).
        mean = jnp.sum(alpha * kstar, axis=0, keepdims=True)   # (1, q)
        quad = jnp.sum(aa * kstar, axis=0, keepdims=True)      # (1, q)
        two_std = 2.0 * jnp.sqrt(jnp.maximum(total_var - quad, 1e-12))

        # Single coalesced (3, q) store per batch element.
        out_ref[b] = mean + slab_sign * two_std


def gp_fused(x_tr, xq_t, y_col, *, lengthscale=LENGTHSCALE,
             outputscale=OUTPUTSCALE, noise=NOISE):
    bsz = x_tr.shape[0]
    q = xq_t.shape[2]
    body = functools.partial(_gp_fused_kernel, lengthscale=lengthscale,
                             outputscale=outputscale, noise=noise)
    return pl.pallas_call(
        body,
        out_shape=jax.ShapeDtypeStruct((bsz, 3, q), jnp.float32),
        in_specs=[_VMEM_SPEC, _VMEM_SPEC, _VMEM_SPEC],
        out_specs=_VMEM_SPEC,
    )(x_tr, xq_t, y_col)


# --------------------------------------------------------------------------
# RegressionEncoderGP.forward equivalent
# --------------------------------------------------------------------------
def regression_encoder_gp_forward(x_train, y_train, x_test):
    """Returns (pred_train, pred_test), each a dict with 'mean'/'lower'/'upper'
    of shape (B, N_query), mirroring gpytorch pred.mean / confidence_region()."""
    x_train = x_train.astype(jnp.float32)
    y_train = y_train.astype(jnp.float32)
    x_test = x_test.astype(jnp.float32)

    n_sub = max(int(x_train.shape[1] * TRAIN_PERIOD_FRACTION), 1)
    x_tr = x_train[:, -n_sub:]
    # TODO(synk): the torch source re-slices y_train by 20% of the *already
    # sliced* x_train (a shape-mismatch bug); we slice y to match x_tr so the
    # exact-GP posterior is well defined.
    y_tr = y_train[:, -n_sub:]

    # TODO(synk): the 10-step Adam hyperparameter fit (self.fit) is a
    # data-dependent autodiff/optimizer loop with no clean Pallas equivalent;
    # deterministic fixed hyperparameters are used instead.

    ntr = x_tr.shape[1]
    # Query block = [train window ; x_test], pre-transposed to (B, D, ntr+nte)
    # so the kernel never does an XLU transpose and computes the train kstar
    # and the train covariance from the same pass.
    xq_t = jnp.concatenate(
        [jnp.swapaxes(x_tr, 1, 2), jnp.swapaxes(x_test, 1, 2)], axis=2)
    y_col = y_tr[:, :, None]                                   # (B, ntr, 1)

    out = gp_fused(x_tr, xq_t, y_col)                          # (B, 3, ntr+nte)

    pred_train = {"mean": out[:, 0, :ntr],
                  "lower": out[:, 1, :ntr],
                  "upper": out[:, 2, :ntr]}
    pred_test = {"mean": out[:, 0, ntr:],
                 "lower": out[:, 1, ntr:],
                 "upper": out[:, 2, ntr:]}
    return pred_train, pred_test


# --------------------------------------------------------------------------
# Pure-JAX reference (same fixed hyperparameters) for correctness checking.
# --------------------------------------------------------------------------
def _reference_forward(x_train, y_train, x_test):
    n_sub = max(int(x_train.shape[1] * TRAIN_PERIOD_FRACTION), 1)
    x_tr = x_train[:, -n_sub:]
    y_tr = y_train[:, -n_sub:]

    def rbf(a, b):
        d2 = jnp.sum((a[:, None, :] - b[None, :, :]) ** 2, axis=-1)
        return OUTPUTSCALE * jnp.exp(-0.5 * d2 / (LENGTHSCALE ** 2))

    def one(xt, yt, xte):
        n = xt.shape[0]
        kmat = rbf(xt, xt) + NOISE * jnp.eye(n, dtype=jnp.float32)

        def pred(xq):
            ks = rbf(xt, xq)                                  # (n, nq)
            alpha = jnp.linalg.solve(kmat, yt[:, None])       # (n, 1)
            aa = jnp.linalg.solve(kmat, ks)                   # (n, nq)
            mean = jnp.sum(alpha * ks, axis=0)
            var = OUTPUTSCALE + NOISE - jnp.sum(ks * aa, axis=0)
            ts = 2.0 * jnp.sqrt(jnp.maximum(var, 1e-12))
            return mean, mean - ts, mean + ts

        return pred(xt), pred(xte)

    (tr_m, tr_l, tr_u), (te_m, te_l, te_u) = jax.vmap(one)(x_tr, y_tr, x_test)
    return ({"mean": tr_m, "lower": tr_l, "upper": tr_u},
            {"mean": te_m, "lower": te_l, "upper": te_u})


if __name__ == "__main__":
    # Module config analog: input_dim=4, output_dim=1, targets=['t'], batch_size=2
    #   -> GP batch dim B = output_dim * len(targets) * batch_size = 2
    B, N_TRAIN, N_TEST, D = 2, 40, 8, 4

    key = jax.random.PRNGKey(0)
    k1, k2, k3 = jax.random.split(key, 3)
    x_train = jax.random.normal(k1, (B, N_TRAIN, D), dtype=jnp.float32)
    y_train = jax.random.normal(k2, (B, N_TRAIN), dtype=jnp.float32)
    x_test = jax.random.normal(k3, (B, N_TEST, D), dtype=jnp.float32)

    pred_train, pred_test = jax.jit(regression_encoder_gp_forward)(
        x_train, y_train, x_test
    )
    jax.block_until_ready((pred_train, pred_test))

    n_sub = int(N_TRAIN * TRAIN_PERIOD_FRACTION)
    assert pred_train["mean"].shape == (B, n_sub)
    assert pred_train["lower"].shape == (B, n_sub)
    assert pred_train["upper"].shape == (B, n_sub)
    assert pred_test["mean"].shape == (B, N_TEST)
    assert pred_test["lower"].shape == (B, N_TEST)
    assert pred_test["upper"].shape == (B, N_TEST)
    assert bool(jnp.all(jnp.isfinite(pred_train["mean"])))
    assert bool(jnp.all(jnp.isfinite(pred_test["mean"])))
    assert bool(jnp.all(pred_train["lower"] <= pred_train["upper"]))
    assert bool(jnp.all(pred_test["lower"] <= pred_test["upper"]))

    # Numerical check against the pure-JAX reference (same hyperparameters).
    ref_train, ref_test = jax.jit(_reference_forward)(x_train, y_train, x_test)
    for got, ref in ((pred_train, ref_train), (pred_test, ref_test)):
        for k in ("mean", "lower", "upper"):
            err = float(jnp.max(jnp.abs(got[k] - ref[k])))
            assert err < 1e-3, f"{k} mismatch: max abs err {err}"

    print("KERNEL_OK")
</pallas_src>

<mosaic_0001>
module attributes {stable_mosaic.version = 11 : i64} {
  func.func @_gp_fused_kernel(%arg0: memref<2x8x4xf32, #tpu.memory_space<vmem>>, %arg1: memref<2x4x16xf32, #tpu.memory_space<vmem>>, %arg2: memref<2x8x1xf32, #tpu.memory_space<vmem>>, %arg3: memref<2x3x16xf32, #tpu.memory_space<vmem>>) attributes {dimension_semantics = [], scalar_prefetch = 0 : i64, scratch_operands = 0 : i64, tpu.core_type = #tpu.core_type<tc>} {
    %0 = tpu.iota {dimensions = array<i32: 0>} : vector<8x8xi32>
    %1 = tpu.iota {dimensions = array<i32: 1>} : vector<8x8xi32>
    %2 = arith.cmpi eq, %0, %1 : vector<8x8xi32>
    %cst = arith.constant 1.000000e-01 : f32
    %cst_0 = arith.constant 0.000000e+00 : f32
    %3 = vector.broadcast %cst : f32 to vector<8x8xf32>
    %4 = vector.broadcast %cst_0 : f32 to vector<8x8xf32>
    %5 = arith.select %2, %3, %4 : vector<8x8xi1>, vector<8x8xf32>
    %6 = tpu.iota {dimensions = array<i32: 0>} : vector<8x1xi32>
    %7 = tpu.iota {dimensions = array<i32: 0>} : vector<3x1xi32>
    %c0_i32 = arith.constant 0 : i32
    %8 = vector.broadcast %c0_i32 : i32 to vector<3x1xi32>
    %9 = arith.cmpi eq, %7, %8 : vector<3x1xi32>
    %c1_i32 = arith.constant 1 : i32
    %10 = vector.broadcast %c1_i32 : i32 to vector<3x1xi32>
    %11 = arith.cmpi eq, %7, %10 : vector<3x1xi32>
    %cst_1 = arith.constant -1.000000e+00 : f32
    %cst_2 = arith.constant 1.000000e+00 : f32
    %12 = vector.broadcast %cst_1 : f32 to vector<3x1xf32>
    %13 = vector.broadcast %cst_2 : f32 to vector<3x1xf32>
    %14 = arith.select %11, %12, %13 : vector<3x1xi1>, vector<3x1xf32>
    %cst_3 = arith.constant 0.000000e+00 : f32
    %15 = vector.broadcast %cst_3 : f32 to vector<3x1xf32>
    %16 = arith.select %9, %15, %14 : vector<3x1xi1>, vector<3x1xf32>
    %c0 = arith.constant 0 : index
    %c0_4 = arith.constant 0 : index
    %c0_5 = arith.constant 0 : index
    %17 = vector.load %arg0[%c0, %c0_4, %c0_5] : memref<2x8x4xf32, #tpu.memory_space<vmem>>, vector<1x8x4xf32>
    %18 = vector.shape_cast %17 : vector<1x8x4xf32> to vector<8x4xf32>
    %c0_6 = arith.constant 0 : index
    %c0_7 = arith.constant 0 : index
    %c0_8 = arith.constant 0 : index
    %19 = vector.load %arg1[%c0_6, %c0_7, %c0_8] : memref<2x4x16xf32, #tpu.memory_space<vmem>>, vector<1x4x16xf32>
    %20 = vector.shape_cast %19 : vector<1x4x16xf32> to vector<4x16xf32>
    %c0_9 = arith.constant 0 : index
    %c0_10 = arith.constant 0 : index
    %c0_11 = arith.constant 0 : index
    %21 = vector.load %arg2[%c0_9, %c0_10, %c0_11] : memref<2x8x1xf32, #tpu.memory_space<vmem>>, vector<1x8x1xf32>
    %22 = vector.shape_cast %21 : vector<1x8x1xf32> to vector<8x1xf32>
    %cst_12 = arith.constant 0.000000e+00 : f32
    %23 = vector.broadcast %cst_12 : f32 to vector<8x16xf32>
    %24 = vector.extract_strided_slice %18 {offsets = [0, 0], sizes = [8, 1], strides = [1, 1]} : vector<8x4xf32> to vector<8x1xf32>
    %25 = vector.extract_strided_slice %20 {offsets = [0, 0], sizes = [1, 16], strides = [1, 1]} : vector<4x16xf32> to vector<1x16xf32>
    %26 = vector.broadcast %24 : vector<8x1xf32> to vector<8x16xf32>
    %27 = vector.broadcast %25 : vector<1x16xf32> to vector<8x16xf32>
    %28 = arith.subf %26, %27 : vector<8x16xf32>
    %29 = arith.mulf %28, %28 : vector<8x16xf32>
    %30 = arith.addf %23, %29 : vector<8x16xf32>
    %31 = vector.extract_strided_slice %18 {offsets = [0, 1], sizes = [8, 1], strides = [1, 1]} : vector<8x4xf32> to vector<8x1xf32>
    %32 = vector.extract_strided_slice %20 {offsets = [1, 0], sizes = [1, 16], strides = [1, 1]} : vector<4x16xf32> to vector<1x16xf32>
    %33 = vector.broadcast %31 : vector<8x1xf32> to vector<8x16xf32>
    %34 = vector.broadcast %32 : vector<1x16xf32> to vector<8x16xf32>
    %35 = arith.subf %33, %34 : vector<8x16xf32>
    %36 = arith.mulf %35, %35 : vector<8x16xf32>
    %37 = arith.addf %30, %36 : vector<8x16xf32>
    %38 = vector.extract_strided_slice %18 {offsets = [0, 2], sizes = [8, 1], strides = [1, 1]} : vector<8x4xf32> to vector<8x1xf32>
    %39 = vector.extract_strided_slice %20 {offsets = [2, 0], sizes = [1, 16], strides = [1, 1]} : vector<4x16xf32> to vector<1x16xf32>
    %40 = vector.broadcast %38 : vector<8x1xf32> to vector<8x16xf32>
    %41 = vector.broadcast %39 : vector<1x16xf32> to vector<8x16xf32>
    %42 = arith.subf %40, %41 : vector<8x16xf32>
    %43 = arith.mulf %42, %42 : vector<8x16xf32>
    %44 = arith.addf %37, %43 : vector<8x16xf32>
    %45 = vector.extract_strided_slice %18 {offsets = [0, 3], sizes = [8, 1], strides = [1, 1]} : vector<8x4xf32> to vector<8x1xf32>
    %46 = vector.extract_strided_slice %20 {offsets = [3, 0], sizes = [1, 16], strides = [1, 1]} : vector<4x16xf32> to vector<1x16xf32>
    %47 = vector.broadcast %45 : vector<8x1xf32> to vector<8x16xf32>
    %48 = vector.broadcast %46 : vector<1x16xf32> to vector<8x16xf32>
    %49 = arith.subf %47, %48 : vector<8x16xf32>
    %50 = arith.mulf %49, %49 : vector<8x16xf32>
    %51 = arith.addf %44, %50 : vector<8x16xf32>
    %cst_13 = arith.constant 0.000000e+00 : f32
    %52 = vector.broadcast %cst_13 : f32 to vector<8x16xf32>
    %53 = arith.subf %52, %51 : vector<8x16xf32>
    %cst_14 = arith.constant 5.000000e-01 : f32
    %54 = vector.broadcast %cst_14 : f32 to vector<8x16xf32>
    %55 = arith.mulf %53, %54 : vector<8x16xf32>
    %56 = math.exp %55 : vector<8x16xf32>
    %cst_15 = arith.constant 1.000000e+00 : f32
    %57 = vector.broadcast %cst_15 : f32 to vector<8x16xf32>
    %58 = arith.mulf %57, %56 : vector<8x16xf32>
    %59 = vector.extract_strided_slice %58 {offsets = [0, 0], sizes = [8, 8], strides = [1, 1]} : vector<8x16xf32> to vector<8x8xf32>
    %60 = arith.addf %59, %5 : vector<8x8xf32>
    %61 = vector.extract_strided_slice %60 {offsets = [0, 0], sizes = [1, 1], strides = [1, 1]} : vector<8x8xf32> to vector<1x1xf32>
    %cst_16 = arith.constant 1.000000e+00 : f32
    %62 = vector.broadcast %cst_16 : f32 to vector<1x1xf32>
    %63 = arith.divf %62, %61 : vector<1x1xf32>
    %64 = vector.extract_strided_slice %60 {offsets = [0, 0], sizes = [1, 8], strides = [1, 1]} : vector<8x8xf32> to vector<1x8xf32>
    %65 = vector.broadcast %63 : vector<1x1xf32> to vector<1x8xf32>
    %66 = arith.mulf %64, %65 : vector<1x8xf32>
    %67 = vector.extract_strided_slice %22 {offsets = [0, 0], sizes = [1, 1], strides = [1, 1]} : vector<8x1xf32> to vector<1x1xf32>
    %68 = arith.mulf %67, %63 : vector<1x1xf32>
    %69 = vector.extract_strided_slice %58 {offsets = [0, 0], sizes = [1, 16], strides = [1, 1]} : vector<8x16xf32> to vector<1x16xf32>
    %70 = vector.broadcast %63 : vector<1x1xf32> to vector<1x16xf32>
    %71 = arith.mulf %69, %70 : vector<1x16xf32>
    %c0_i32_17 = arith.constant 0 : i32
    %72 = vector.broadcast %c0_i32_17 : i32 to vector<8x1xi32>
    %73 = arith.cmpi eq, %6, %72 : vector<8x1xi32>
    %74 = vector.extract_strided_slice %60 {offsets = [0, 0], sizes = [8, 1], strides = [1, 1]} : vector<8x8xf32> to vector<8x1xf32>
    %75 = vector.broadcast %74 : vector<8x1xf32> to vector<8x8xf32>
    %76 = vector.broadcast %66 : vector<1x8xf32> to vector<8x8xf32>
    %77 = arith.mulf %75, %76 : vector<8x8xf32>
    %78 = arith.subf %60, %77 : vector<8x8xf32>
    %79 = vector.shape_cast %73 : vector<8x1xi1> to vector<8x1xi1>
    %80 = vector.broadcast %79 : vector<8x1xi1> to vector<8x8xi1>
    %81 = vector.shape_cast %66 : vector<1x8xf32> to vector<1x8xf32>
    %82 = vector.broadcast %81 : vector<1x8xf32> to vector<8x8xf32>
    %83 = arith.select %80, %82, %78 : vector<8x8xi1>, vector<8x8xf32>
    %84 = vector.broadcast %68 : vector<1x1xf32> to vector<8x1xf32>
    %85 = arith.mulf %74, %84 : vector<8x1xf32>
    %86 = arith.subf %22, %85 : vector<8x1xf32>
    %87 = vector.shape_cast %68 : vector<1x1xf32> to vector<1x1xf32>
    %88 = vector.broadcast %87 : vector<1x1xf32> to vector<8x1xf32>
    %89 = arith.select %73, %88, %86 : vector<8x1xi1>, vector<8x1xf32>
    %90 = vector.broadcast %74 : vector<8x1xf32> to vector<8x16xf32>
    %91 = vector.broadcast %71 : vector<1x16xf32> to vector<8x16xf32>
    %92 = arith.mulf %90, %91 : vector<8x16xf32>
    %93 = arith.subf %58, %92 : vector<8x16xf32>
    %94 = vector.shape_cast %73 : vector<8x1xi1> to vector<8x1xi1>
    %95 = vector.broadcast %94 : vector<8x1xi1> to vector<8x16xi1>
    %96 = vector.shape_cast %71 : vector<1x16xf32> to vector<1x16xf32>
    %97 = vector.broadcast %96 : vector<1x16xf32> to vector<8x16xf32>
    %98 = arith.select %95, %97, %93 : vector<8x16xi1>, vector<8x16xf32>
    %99 = vector.extract_strided_slice %83 {offsets = [1, 1], sizes = [1, 1], strides = [1, 1]} : vector<8x8xf32> to vector<1x1xf32>
    %cst_18 = arith.constant 1.000000e+00 : f32
    %100 = vector.broadcast %cst_18 : f32 to vector<1x1xf32>
    %101 = arith.divf %100, %99 : vector<1x1xf32>
    %102 = vector.extract_strided_slice %83 {offsets = [1, 0], sizes = [1, 8], strides = [1, 1]} : vector<8x8xf32> to vector<1x8xf32>
    %103 = vector.broadcast %101 : vector<1x1xf32> to vector<1x8xf32>
    %104 = arith.mulf %102, %103 : vector<1x8xf32>
    %105 = vector.extract_strided_slice %89 {offsets = [1, 0], sizes = [1, 1], strides = [1, 1]} : vector<8x1xf32> to vector<1x1xf32>
    %106 = arith.mulf %105, %101 : vector<1x1xf32>
    %107 = vector.extract_strided_slice %98 {offsets = [1, 0], sizes = [1, 16], strides = [1, 1]} : vector<8x16xf32> to vector<1x16xf32>
    %108 = vector.broadcast %101 : vector<1x1xf32> to vector<1x16xf32>
    %109 = arith.mulf %107, %108 : vector<1x16xf32>
    %c1_i32_19 = arith.constant 1 : i32
    %110 = vector.broadcast %c1_i32_19 : i32 to vector<8x1xi32>
    %111 = arith.cmpi eq, %6, %110 : vector<8x1xi32>
    %112 = vector.extract_strided_slice %83 {offsets = [0, 1], sizes = [8, 1], strides = [1, 1]} : vector<8x8xf32> to vector<8x1xf32>
    %113 = vector.broadcast %112 : vector<8x1xf32> to vector<8x8xf32>
    %114 = vector.broadcast %104 : vector<1x8xf32> to vector<8x8xf32>
    %115 = arith.mulf %113, %114 : vector<8x8xf32>
    %116 = arith.subf %83, %115 : vector<8x8xf32>
    %117 = vector.shape_cast %111 : vector<8x1xi1> to vector<8x1xi1>
    %118 = vector.broadcast %117 : vector<8x1xi1> to vector<8x8xi1>
    %119 = vector.shape_cast %104 : vector<1x8xf32> to vector<1x8xf32>
    %120 = vector.broadcast %119 : vector<1x8xf32> to vector<8x8xf32>
    %121 = arith.select %118, %120, %116 : vector<8x8xi1>, vector<8x8xf32>
    %122 = vector.broadcast %106 : vector<1x1xf32> to vector<8x1xf32>
    %123 = arith.mulf %112, %122 : vector<8x1xf32>
    %124 = arith.subf %89, %123 : vector<8x1xf32>
    %125 = vector.shape_cast %106 : vector<1x1xf32> to vector<1x1xf32>
    %126 = vector.broadcast %125 : vector<1x1xf32> to vector<8x1xf32>
    %127 = arith.select %111, %126, %124 : vector<8x1xi1>, vector<8x1xf32>
    %128 = vector.broadcast %112 : vector<8x1xf32> to vector<8x16xf32>
    %129 = vector.broadcast %109 : vector<1x16xf32> to vector<8x16xf32>
    %130 = arith.mulf %128, %129 : vector<8x16xf32>
    %131 = arith.subf %98, %130 : vector<8x16xf32>
    %132 = vector.shape_cast %111 : vector<8x1xi1> to vector<8x1xi1>
    %133 = vector.broadcast %132 : vector<8x1xi1> to vector<8x16xi1>
    %134 = vector.shape_cast %109 : vector<1x16xf32> to vector<1x16xf32>
    %135 = vector.broadcast %134 : vector<1x16xf32> to vector<8x16xf32>
    %136 = arith.select %133, %135, %131 : vector<8x16xi1>, vector<8x16xf32>
    %137 = vector.extract_strided_slice %121 {offsets = [2, 2], sizes = [1, 1], strides = [1, 1]} : vector<8x8xf32> to vector<1x1xf32>
    %cst_20 = arith.constant 1.000000e+00 : f32
    %138 = vector.broadcast %cst_20 : f32 to vector<1x1xf32>
    %139 = arith.divf %138, %137 : vector<1x1xf32>
    %140 = vector.extract_strided_slice %121 {offsets = [2, 0], sizes = [1, 8], strides = [1, 1]} : vector<8x8xf32> to vector<1x8xf32>
    %141 = vector.broadcast %139 : vector<1x1xf32> to vector<1x8xf32>
    %142 = arith.mulf %140, %141 : vector<1x8xf32>
    %143 = vector.extract_strided_slice %127 {offsets = [2, 0], sizes = [1, 1], strides = [1, 1]} : vector<8x1xf32> to vector<1x1xf32>
    %144 = arith.mulf %143, %139 : vector<1x1xf32>
    %145 = vector.extract_strided_slice %136 {offsets = [2, 0], sizes = [1, 16], strides = [1, 1]} : vector<8x16xf32> to vector<1x16xf32>
    %146 = vector.broadcast %139 : vector<1x1xf32> to vector<1x16xf32>
    %147 = arith.mulf %145, %146 : vector<1x16xf32>
    %c2_i32 = arith.constant 2 : i32
    %148 = vector.broadcast %c2_i32 : i32 to vector<8x1xi32>
    %149 = arith.cmpi eq, %6, %148 : vector<8x1xi32>
    %150 = vector.extract_strided_slice %121 {offsets = [0, 2], sizes = [8, 1], strides = [1, 1]} : vector<8x8xf32> to vector<8x1xf32>
    %151 = vector.broadcast %150 : vector<8x1xf32> to vector<8x8xf32>
    %152 = vector.broadcast %142 : vector<1x8xf32> to vector<8x8xf32>
    %153 = arith.mulf %151, %152 : vector<8x8xf32>
    %154 = arith.subf %121, %153 : vector<8x8xf32>
    %155 = vector.shape_cast %149 : vector<8x1xi1> to vector<8x1xi1>
    %156 = vector.broadcast %155 : vector<8x1xi1> to vector<8x8xi1>
    %157 = vector.shape_cast %142 : vector<1x8xf32> to vector<1x8xf32>
    %158 = vector.broadcast %157 : vector<1x8xf32> to vector<8x8xf32>
    %159 = arith.select %156, %158, %154 : vector<8x8xi1>, vector<8x8xf32>
    %160 = vector.broadcast %144 : vector<1x1xf32> to vector<8x1xf32>
    %161 = arith.mulf %150, %160 : vector<8x1xf32>
    %162 = arith.subf %127, %161 : vector<8x1xf32>
    %163 = vector.shape_cast %144 : vector<1x1xf32> to vector<1x1xf32>
    %164 = vector.broadcast %163 : vector<1x1xf32> to vector<8x1xf32>
    %165 = arith.select %149, %164, %162 : vector<8x1xi1>, vector<8x1xf32>
    %166 = vector.broadcast %150 : vector<8x1xf32> to vector<8x16xf32>
    %167 = vector.broadcast %147 : vector<1x16xf32> to vector<8x16xf32>
    %168 = arith.mulf %166, %167 : vector<8x16xf32>
    %169 = arith.subf %136, %168 : vector<8x16xf32>
    %170 = vector.shape_cast %149 : vector<8x1xi1> to vector<8x1xi1>
    %171 = vector.broadcast %170 : vector<8x1xi1> to vector<8x16xi1>
    %172 = vector.shape_cast %147 : vector<1x16xf32> to vector<1x16xf32>
    %173 = vector.broadcast %172 : vector<1x16xf32> to vector<8x16xf32>
    %174 = arith.select %171, %173, %169 : vector<8x16xi1>, vector<8x16xf32>
    %175 = vector.extract_strided_slice %159 {offsets = [3, 3], sizes = [1, 1], strides = [1, 1]} : vector<8x8xf32> to vector<1x1xf32>
    %cst_21 = arith.constant 1.000000e+00 : f32
    %176 = vector.broadcast %cst_21 : f32 to vector<1x1xf32>
    %177 = arith.divf %176, %175 : vector<1x1xf32>
    %178 = vector.extract_strided_slice %159 {offsets = [3, 0], sizes = [1, 8], strides = [1, 1]} : vector<8x8xf32> to vector<1x8xf32>
    %179 = vector.broadcast %177 : vector<1x1xf32> to vector<1x8xf32>
    %180 = arith.mulf %178, %179 : vector<1x8xf32>
    %181 = vector.extract_strided_slice %165 {offsets = [3, 0], sizes = [1, 1], strides = [1, 1]} : vector<8x1xf32> to vector<1x1xf32>
    %182 = arith.mulf %181, %177 : vector<1x1xf32>
    %183 = vector.extract_strided_slice %174 {offsets = [3, 0], sizes = [1, 16], strides = [1, 1]} : vector<8x16xf32> to vector<1x16xf32>
    %184 = vector.broadcast %177 : vector<1x1xf32> to vector<1x16xf32>
    %185 = arith.mulf %183, %184 : vector<1x16xf32>
    %c3_i32 = arith.constant 3 : i32
    %186 = vector.broadcast %c3_i32 : i32 to vector<8x1xi32>
    %187 = arith.cmpi eq, %6, %186 : vector<8x1xi32>
    %188 = vector.extract_strided_slice %159 {offsets = [0, 3], sizes = [8, 1], strides = [1, 1]} : vector<8x8xf32> to vector<8x1xf32>
    %189 = vector.broadcast %188 : vector<8x1xf32> to vector<8x8xf32>
    %190 = vector.broadcast %180 : vector<1x8xf32> to vector<8x8xf32>
    %191 = arith.mulf %189, %190 : vector<8x8xf32>
    %192 = arith.subf %159, %191 : vector<8x8xf32>
    %193 = vector.shape_cast %187 : vector<8x1xi1> to vector<8x1xi1>
    %194 = vector.broadcast %193 : vector<8x1xi1> to vector<8x8xi1>
    %195 = vector.shape_cast %180 : vector<1x8xf32> to vector<1x8xf32>
    %196 = vector.broadcast %195 : vector<1x8xf32> to vector<8x8xf32>
    %197 = arith.select %194, %196, %192 : vector<8x8xi1>, vector<8x8xf32>
    %198 = vector.broadcast %182 : vector<1x1xf32> to vector<8x1xf32>
    %199 = arith.mulf %188, %198 : vector<8x1xf32>
    %200 = arith.subf %165, %199 : vector<8x1xf32>
    %201 = vector.shape_cast %182 : vector<1x1xf32> to vector<1x1xf32>
    %202 = vector.broadcast %201 : vector<1x1xf32> to vector<8x1xf32>
    %203 = arith.select %187, %202, %200 : vector<8x1xi1>, vector<8x1xf32>
    %204 = vector.broadcast %188 : vector<8x1xf32> to vector<8x16xf32>
    %205 = vector.broadcast %185 : vector<1x16xf32> to vector<8x16xf32>
    %206 = arith.mulf %204, %205 : vector<8x16xf32>
    %207 = arith.subf %174, %206 : vector<8x16xf32>
    %208 = vector.shape_cast %187 : vector<8x1xi1> to vector<8x1xi1>
    %209 = vector.broadcast %208 : vector<8x1xi1> to vector<8x16xi1>
    %210 = vector.shape_cast %185 : vector<1x16xf32> to vector<1x16xf32>
    %211 = vector.broadcast %210 : vector<1x16xf32> to vector<8x16xf32>
    %212 = arith.select %209, %211, %207 : vector<8x16xi1>, vector<8x16xf32>
    %213 = vector.extract_strided_slice %197 {offsets = [4, 4], sizes = [1, 1], strides = [1, 1]} : vector<8x8xf32> to vector<1x1xf32>
    %cst_22 = arith.constant 1.000000e+00 : f32
    %214 = vector.broadcast %cst_22 : f32 to vector<1x1xf32>
    %215 = arith.divf %214, %213 : vector<1x1xf32>
    %216 = vector.extract_strided_slice %197 {offsets = [4, 0], sizes = [1, 8], strides = [1, 1]} : vector<8x8xf32> to vector<1x8xf32>
    %217 = vector.broadcast %215 : vector<1x1xf32> to vector<1x8xf32>
    %218 = arith.mulf %216, %217 : vector<1x8xf32>
    %219 = vector.extract_strided_slice %203 {offsets = [4, 0], sizes = [1, 1], strides = [1, 1]} : vector<8x1xf32> to vector<1x1xf32>
    %220 = arith.mulf %219, %215 : vector<1x1xf32>
    %221 = vector.extract_strided_slice %212 {offsets = [4, 0], sizes = [1, 16], strides = [1, 1]} : vector<8x16xf32> to vector<1x16xf32>
    %222 = vector.broadcast %215 : vector<1x1xf32> to vector<1x16xf32>
    %223 = arith.mulf %221, %222 : vector<1x16xf32>
    %c4_i32 = arith.constant 4 : i32
    %224 = vector.broadcast %c4_i32 : i32 to vector<8x1xi32>
    %225 = arith.cmpi eq, %6, %224 : vector<8x1xi32>
    %226 = vector.extract_strided_slice %197 {offsets = [0, 4], sizes = [8, 1], strides = [1, 1]} : vector<8x8xf32> to vector<8x1xf32>
    %227 = vector.broadcast %226 : vector<8x1xf32> to vector<8x8xf32>
    %228 = vector.broadcast %218 : vector<1x8xf32> to vector<8x8xf32>
    %229 = arith.mulf %227, %228 : vector<8x8xf32>
    %230 = arith.subf %197, %229 : vector<8x8xf32>
    %231 = vector.shape_cast %225 : vector<8x1xi1> to vector<8x1xi1>
    %232 = vector.broadcast %231 : vector<8x1xi1> to vector<8x8xi1>
    %233 = vector.shape_cast %218 : vector<1x8xf32> to vector<1x8xf32>
    %234 = vector.broadcast %233 : vector<1x8xf32> to vector<8x8xf32>
    %235 = arith.select %232, %234, %230 : vector<8x8xi1>, vector<8x8xf32>
    %236 = vector.broadcast %220 : vector<1x1xf32> to vector<8x1xf32>
    %237 = arith.mulf %226, %236 : vector<8x1xf32>
    %238 = arith.subf %203, %237 : vector<8x1xf32>
    %239 = vector.shape_cast %220 : vector<1x1xf32> to vector<1x1xf32>
    %240 = vector.broadcast %239 : vector<1x1xf32> to vector<8x1xf32>
    %241 = arith.select %225, %240, %238 : vector<8x1xi1>, vector<8x1xf32>
    %242 = vector.broadcast %226 : vector<8x1xf32> to vector<8x16xf32>
    %243 = vector.broadcast %223 : vector<1x16xf32> to vector<8x16xf32>
    %244 = arith.mulf %242, %243 : vector<8x16xf32>
    %245 = arith.subf %212, %244 : vector<8x16xf32>
    %246 = vector.shape_cast %225 : vector<8x1xi1> to vector<8x1xi1>
    %247 = vector.broadcast %246 : vector<8x1xi1> to vector<8x16xi1>
    %248 = vector.shape_cast %223 : vector<1x16xf32> to vector<1x16xf32>
    %249 = vector.broadcast %248 : vector<1x16xf32> to vector<8x16xf32>
    %250 = arith.select %247, %249, %245 : vector<8x16xi1>, vector<8x16xf32>
    %251 = vector.extract_strided_slice %235 {offsets = [5, 5], sizes = [1, 1], strides = [1, 1]} : vector<8x8xf32> to vector<1x1xf32>
    %cst_23 = arith.constant 1.000000e+00 : f32
    %252 = vector.broadcast %cst_23 : f32 to vector<1x1xf32>
    %253 = arith.divf %252, %251 : vector<1x1xf32>
    %254 = vector.extract_strided_slice %235 {offsets = [5, 0], sizes = [1, 8], strides = [1, 1]} : vector<8x8xf32> to vector<1x8xf32>
    %255 = vector.broadcast %253 : vector<1x1xf32> to vector<1x8xf32>
    %256 = arith.mulf %254, %255 : vector<1x8xf32>
    %257 = vector.extract_strided_slice %241 {offsets = [5, 0], sizes = [1, 1], strides = [1, 1]} : vector<8x1xf32> to vector<1x1xf32>
    %258 = arith.mulf %257, %253 : vector<1x1xf32>
    %259 = vector.extract_strided_slice %250 {offsets = [5, 0], sizes = [1, 16], strides = [1, 1]} : vector<8x16xf32> to vector<1x16xf32>
    %260 = vector.broadcast %253 : vector<1x1xf32> to vector<1x16xf32>
    %261 = arith.mulf %259, %260 : vector<1x16xf32>
    %c5_i32 = arith.constant 5 : i32
    %262 = vector.broadcast %c5_i32 : i32 to vector<8x1xi32>
    %263 = arith.cmpi eq, %6, %262 : vector<8x1xi32>
    %264 = vector.extract_strided_slice %235 {offsets = [0, 5], sizes = [8, 1], strides = [1, 1]} : vector<8x8xf32> to vector<8x1xf32>
    %265 = vector.broadcast %264 : vector<8x1xf32> to vector<8x8xf32>
    %266 = vector.broadcast %256 : vector<1x8xf32> to vector<8x8xf32>
    %267 = arith.mulf %265, %266 : vector<8x8xf32>
    %268 = arith.subf %235, %267 : vector<8x8xf32>
    %269 = vector.shape_cast %263 : vector<8x1xi1> to vector<8x1xi1>
    %270 = vector.broadcast %269 : vector<8x1xi1> to vector<8x8xi1>
    %271 = vector.shape_cast %256 : vector<1x8xf32> to vector<1x8xf32>
    %272 = vector.broadcast %271 : vector<1x8xf32> to vector<8x8xf32>
    %273 = arith.select %270, %272, %268 : vector<8x8xi1>, vector<8x8xf32>
    %274 = vector.broadcast %258 : vector<1x1xf32> to vector<8x1xf32>
    %275 = arith.mulf %264, %274 : vector<8x1xf32>
    %276 = arith.subf %241, %275 : vector<8x1xf32>
    %277 = vector.shape_cast %258 : vector<1x1xf32> to vector<1x1xf32>
    %278 = vector.broadcast %277 : vector<1x1xf32> to vector<8x1xf32>
    %279 = arith.select %263, %278, %276 : vector<8x1xi1>, vector<8x1xf32>
    %280 = vector.broadcast %264 : vector<8x1xf32> to vector<8x16xf32>
    %281 = vector.broadcast %261 : vector<1x16xf32> to vector<8x16xf32>
    %282 = arith.mulf %280, %281 : vector<8x16xf32>
    %283 = arith.subf %250, %282 : vector<8x16xf32>
    %284 = vector.shape_cast %263 : vector<8x1xi1> to vector<8x1xi1>
    %285 = vector.broadcast %284 : vector<8x1xi1> to vector<8x16xi1>
    %286 = vector.shape_cast %261 : vector<1x16xf32> to vector<1x16xf32>
    %287 = vector.broadcast %286 : vector<1x16xf32> to vector<8x16xf32>
    %288 = arith.select %285, %287, %283 : vector<8x16xi1>, vector<8x16xf32>
    %289 = vector.extract_strided_slice %273 {offsets = [6, 6], sizes = [1, 1], strides = [1, 1]} : vector<8x8xf32> to vector<1x1xf32>
    %cst_24 = arith.constant 1.000000e+00 : f32
    %290 = vector.broadcast %cst_24 : f32 to vector<1x1xf32>
    %291 = arith.divf %290, %289 : vector<1x1xf32>
    %292 = vector.extract_strided_slice %273 {offsets = [6, 0], sizes = [1, 8], strides = [1, 1]} : vector<8x8xf32> to vector<1x8xf32>
    %293 = vector.broadcast %291 : vector<1x1xf32> to vector<1x8xf32>
    %294 = arith.mulf %292, %293 : vector<1x8xf32>
    %295 = vector.extract_strided_slice %279 {offsets = [6, 0], sizes = [1, 1], strides = [1, 1]} : vector<8x1xf32> to vector<1x1xf32>
    %296 = arith.mulf %295, %291 : vector<1x1xf32>
    %297 = vector.extract_strided_slice %288 {offsets = [6, 0], sizes = [1, 16], strides = [1, 1]} : vector<8x16xf32> to vector<1x16xf32>
    %298 = vector.broadcast %291 : vector<1x1xf32> to vector<1x16xf32>
    %299 = arith.mulf %297, %298 : vector<1x16xf32>
    %c6_i32 = arith.constant 6 : i32
    %300 = vector.broadcast %c6_i32 : i32 to vector<8x1xi32>
    %301 = arith.cmpi eq, %6, %300 : vector<8x1xi32>
    %302 = vector.extract_strided_slice %273 {offsets = [0, 6], sizes = [8, 1], strides = [1, 1]} : vector<8x8xf32> to vector<8x1xf32>
    %303 = vector.broadcast %302 : vector<8x1xf32> to vector<8x8xf32>
    %304 = vector.broadcast %294 : vector<1x8xf32> to vector<8x8xf32>
    %305 = arith.mulf %303, %304 : vector<8x8xf32>
    %306 = arith.subf %273, %305 : vector<8x8xf32>
    %307 = vector.shape_cast %301 : vector<8x1xi1> to vector<8x1xi1>
    %308 = vector.broadcast %307 : vector<8x1xi1> to vector<8x8xi1>
    %309 = vector.shape_cast %294 : vector<1x8xf32> to vector<1x8xf32>
    %310 = vector.broadcast %309 : vector<1x8xf32> to vector<8x8xf32>
    %311 = arith.select %308, %310, %306 : vector<8x8xi1>, vector<8x8xf32>
    %312 = vector.broadcast %296 : vector<1x1xf32> to vector<8x1xf32>
    %313 = arith.mulf %302, %312 : vector<8x1xf32>
    %314 = arith.subf %279, %313 : vector<8x1xf32>
    %315 = vector.shape_cast %296 : vector<1x1xf32> to vector<1x1xf32>
    %316 = vector.broadcast %315 : vector<1x1xf32> to vector<8x1xf32>
    %317 = arith.select %301, %316, %314 : vector<8x1xi1>, vector<8x1xf32>
    %318 = vector.broadcast %302 : vector<8x1xf32> to vector<8x16xf32>
    %319 = vector.broadcast %299 : vector<1x16xf32> to vector<8x16xf32>
    %320 = arith.mulf %318, %319 : vector<8x16xf32>
    %321 = arith.subf %288, %320 : vector<8x16xf32>
    %322 = vector.shape_cast %301 : vector<8x1xi1> to vector<8x1xi1>
    %323 = vector.broadcast %322 : vector<8x1xi1> to vector<8x16xi1>
    %324 = vector.shape_cast %299 : vector<1x16xf32> to vector<1x16xf32>
    %325 = vector.broadcast %324 : vector<1x16xf32> to vector<8x16xf32>
    %326 = arith.select %323, %325, %321 : vector<8x16xi1>, vector<8x16xf32>
    %327 = vector.extract_strided_slice %311 {offsets = [7, 7], sizes = [1, 1], strides = [1, 1]} : vector<8x8xf32> to vector<1x1xf32>
    %cst_25 = arith.constant 1.000000e+00 : f32
    %328 = vector.broadcast %cst_25 : f32 to vector<1x1xf32>
    %329 = arith.divf %328, %327 : vector<1x1xf32>
    %330 = vector.extract_strided_slice %317 {offsets = [7, 0], sizes = [1, 1], strides = [1, 1]} : vector<8x1xf32> to vector<1x1xf32>
    %331 = arith.mulf %330, %329 : vector<1x1xf32>
    %332 = vector.extract_strided_slice %326 {offsets = [7, 0], sizes = [1, 16], strides = [1, 1]} : vector<8x16xf32> to vector<1x16xf32>
    %333 = vector.broadcast %329 : vector<1x1xf32> to vector<1x16xf32>
    %334 = arith.mulf %332, %333 : vector<1x16xf32>
    %c7_i32 = arith.constant 7 : i32
    %335 = vector.broadcast %c7_i32 : i32 to vector<8x1xi32>
    %336 = arith.cmpi eq, %6, %335 : vector<8x1xi32>
    %337 = vector.extract_strided_slice %311 {offsets = [0, 7], sizes = [8, 1], strides = [1, 1]} : vector<8x8xf32> to vector<8x1xf32>
    %338 = vector.broadcast %331 : vector<1x1xf32> to vector<8x1xf32>
    %339 = arith.mulf %337, %338 : vector<8x1xf32>
    %340 = arith.subf %317, %339 : vector<8x1xf32>
    %341 = vector.shape_cast %331 : vector<1x1xf32> to vector<1x1xf32>
    %342 = vector.broadcast %341 : vector<1x1xf32> to vector<8x1xf32>
    %343 = arith.select %336, %342, %340 : vector<8x1xi1>, vector<8x1xf32>
    %344 = vector.broadcast %337 : vector<8x1xf32> to vector<8x16xf32>
    %345 = vector.broadcast %334 : vector<1x16xf32> to vector<8x16xf32>
    %346 = arith.mulf %344, %345 : vector<8x16xf32>
    %347 = arith.subf %326, %346 : vector<8x16xf32>
    %348 = vector.shape_cast %336 : vector<8x1xi1> to vector<8x1xi1>
    %349 = vector.broadcast %348 : vector<8x1xi1> to vector<8x16xi1>
    %350 = vector.shape_cast %334 : vector<1x16xf32> to vector<1x16xf32>
    %351 = vector.broadcast %350 : vector<1x16xf32> to vector<8x16xf32>
    %352 = arith.select %349, %351, %347 : vector<8x16xi1>, vector<8x16xf32>
    %353 = vector.broadcast %343 : vector<8x1xf32> to vector<8x16xf32>
    %354 = arith.mulf %353, %58 : vector<8x16xf32>
    %cst_26 = arith.constant dense<0.000000e+00> : vector<16xf32>
    %355 = vector.multi_reduction <add>, %354, %cst_26 [0] : vector<8x16xf32> to vector<16xf32>
    %356 = vector.shape_cast %355 : vector<16xf32> to vector<1x16xf32>
    %357 = arith.mulf %352, %58 : vector<8x16xf32>
    %cst_27 = arith.constant dense<0.000000e+00> : vector<16xf32>
    %358 = vector.multi_reduction <add>, %357, %cst_27 [0] : vector<8x16xf32> to vector<16xf32>
    %359 = vector.shape_cast %358 : vector<16xf32> to vector<1x16xf32>
    %cst_28 = arith.constant 1.100000e+00 : f32
    %360 = vector.broadcast %cst_28 : f32 to vector<1x16xf32>
    %361 = arith.subf %360, %359 : vector<1x16xf32>
    %cst_29 = arith.constant 9.99999996E-13 : f32
    %362 = vector.broadcast %cst_29 : f32 to vector<1x16xf32>
    %363 = arith.maximumf %361, %362 : vector<1x16xf32>
    %364 = math.sqrt %363 : vector<1x16xf32>
    %cst_30 = arith.constant 2.000000e+00 : f32
    %365 = vector.broadcast %cst_30 : f32 to vector<1x16xf32>
    %366 = arith.mulf %365, %364 : vector<1x16xf32>
    %367 = vector.broadcast %16 : vector<3x1xf32> to vector<3x16xf32>
    %368 = vector.broadcast %366 : vector<1x16xf32> to vector<3x16xf32>
    %369 = arith.mulf %367, %368 : vector<3x16xf32>
    %370 = vector.broadcast %356 : vector<1x16xf32> to vector<3x16xf32>
    %371 = arith.addf %370, %369 : vector<3x16xf32>
    %c0_31 = arith.constant 0 : index
    %c0_32 = arith.constant 0 : index
    %c0_33 = arith.constant 0 : index
    %372 = vector.load %arg3[%c0_31, %c0_32, %c0_33] : memref<2x3x16xf32, #tpu.memory_space<vmem>>, vector<1x3x16xf32>
    %373 = vector.shape_cast %372 : vector<1x3x16xf32> to vector<3x16xf32>
    %374 = vector.shape_cast %371 : vector<3x16xf32> to vector<1x3x16xf32>
    tpu.vector_store %arg3[%c0_31, %c0_32, %c0_33], %374 {strides = array<i32>} : memref<2x3x16xf32, #tpu.memory_space<vmem>>, vector<1x3x16xf32>,
    %c1 = arith.constant 1 : index
    %c0_34 = arith.constant 0 : index
    %c0_35 = arith.constant 0 : index
    %375 = vector.load %arg0[%c1, %c0_34, %c0_35] : memref<2x8x4xf32, #tpu.memory_space<vmem>>, vector<1x8x4xf32>
    %376 = vector.shape_cast %375 : vector<1x8x4xf32> to vector<8x4xf32>
    %c1_36 = arith.constant 1 : index
    %c0_37 = arith.constant 0 : index
    %c0_38 = arith.constant 0 : index
    %377 = vector.load %arg1[%c1_36, %c0_37, %c0_38] : memref<2x4x16xf32, #tpu.memory_space<vmem>>, vector<1x4x16xf32>
    %378 = vector.shape_cast %377 : vector<1x4x16xf32> to vector<4x16xf32>
    %c1_39 = arith.constant 1 : index
    %c0_40 = arith.constant 0 : index
    %c0_41 = arith.constant 0 : index
    %379 = vector.load %arg2[%c1_39, %c0_40, %c0_41] : memref<2x8x1xf32, #tpu.memory_space<vmem>>, vector<1x8x1xf32>
    %380 = vector.shape_cast %379 : vector<1x8x1xf32> to vector<8x1xf32>
    %cst_42 = arith.constant 0.000000e+00 : f32
    %381 = vector.broadcast %cst_42 : f32 to vector<8x16xf32>
    %382 = vector.extract_strided_slice %376 {offsets = [0, 0], sizes = [8, 1], strides = [1, 1]} : vector<8x4xf32> to vector<8x1xf32>
    %383 = vector.extract_strided_slice %378 {offsets = [0, 0], sizes = [1, 16], strides = [1, 1]} : vector<4x16xf32> to vector<1x16xf32>
    %384 = vector.broadcast %382 : vector<8x1xf32> to vector<8x16xf32>
    %385 = vector.broadcast %383 : vector<1x16xf32> to vector<8x16xf32>
    %386 = arith.subf %384, %385 : vector<8x16xf32>
    %387 = arith.mulf %386, %386 : vector<8x16xf32>
    %388 = arith.addf %381, %387 : vector<8x16xf32>
    %389 = vector.extract_strided_slice %376 {offsets = [0, 1], sizes = [8, 1], strides = [1, 1]} : vector<8x4xf32> to vector<8x1xf32>
    %390 = vector.extract_strided_slice %378 {offsets = [1, 0], sizes = [1, 16], strides = [1, 1]} : vector<4x16xf32> to vector<1x16xf32>
    %391 = vector.broadcast %389 : vector<8x1xf32> to vector<8x16xf32>
    %392 = vector.broadcast %390 : vector<1x16xf32> to vector<8x16xf32>
    %393 = arith.subf %391, %392 : vector<8x16xf32>
    %394 = arith.mulf %393, %393 : vector<8x16xf32>
    %395 = arith.addf %388, %394 : vector<8x16xf32>
    %396 = vector.extract_strided_slice %376 {offsets = [0, 2], sizes = [8, 1], strides = [1, 1]} : vector<8x4xf32> to vector<8x1xf32>
    %397 = vector.extract_strided_slice %378 {offsets = [2, 0], sizes = [1, 16], strides = [1, 1]} : vector<4x16xf32> to vector<1x16xf32>
    %398 = vector.broadcast %396 : vector<8x1xf32> to vector<8x16xf32>
    %399 = vector.broadcast %397 : vector<1x16xf32> to vector<8x16xf32>
    %400 = arith.subf %398, %399 : vector<8x16xf32>
    %401 = arith.mulf %400, %400 : vector<8x16xf32>
    %402 = arith.addf %395, %401 : vector<8x16xf32>
    %403 = vector.extract_strided_slice %376 {offsets = [0, 3], sizes = [8, 1], strides = [1, 1]} : vector<8x4xf32> to vector<8x1xf32>
    %404 = vector.extract_strided_slice %378 {offsets = [3, 0], sizes = [1, 16], strides = [1, 1]} : vector<4x16xf32> to vector<1x16xf32>
    %405 = vector.broadcast %403 : vector<8x1xf32> to vector<8x16xf32>
    %406 = vector.broadcast %404 : vector<1x16xf32> to vector<8x16xf32>
    %407 = arith.subf %405, %406 : vector<8x16xf32>
    %408 = arith.mulf %407, %407 : vector<8x16xf32>
    %409 = arith.addf %402, %408 : vector<8x16xf32>
    %cst_43 = arith.constant 0.000000e+00 : f32
    %410 = vector.broadcast %cst_43 : f32 to vector<8x16xf32>
    %411 = arith.subf %410, %409 : vector<8x16xf32>
    %cst_44 = arith.constant 5.000000e-01 : f32
    %412 = vector.broadcast %cst_44 : f32 to vector<8x16xf32>
    %413 = arith.mulf %411, %412 : vector<8x16xf32>
    %414 = math.exp %413 : vector<8x16xf32>
    %cst_45 = arith.constant 1.000000e+00 : f32
    %415 = vector.broadcast %cst_45 : f32 to vector<8x16xf32>
    %416 = arith.mulf %415, %414 : vector<8x16xf32>
    %417 = vector.extract_strided_slice %416 {offsets = [0, 0], sizes = [8, 8], strides = [1, 1]} : vector<8x16xf32> to vector<8x8xf32>
    %418 = arith.addf %417, %5 : vector<8x8xf32>
    %419 = vector.extract_strided_slice %418 {offsets = [0, 0], sizes = [1, 1], strides = [1, 1]} : vector<8x8xf32> to vector<1x1xf32>
    %cst_46 = arith.constant 1.000000e+00 : f32
    %420 = vector.broadcast %cst_46 : f32 to vector<1x1xf32>
    %421 = arith.divf %420, %419 : vector<1x1xf32>
    %422 = vector.extract_strided_slice %418 {offsets = [0, 0], sizes = [1, 8], strides = [1, 1]} : vector<8x8xf32> to vector<1x8xf32>
    %423 = vector.broadcast %421 : vector<1x1xf32> to vector<1x8xf32>
    %424 = arith.mulf %422, %423 : vector<1x8xf32>
    %425 = vector.extract_strided_slice %380 {offsets = [0, 0], sizes = [1, 1], strides = [1, 1]} : vector<8x1xf32> to vector<1x1xf32>
    %426 = arith.mulf %425, %421 : vector<1x1xf32>
    %427 = vector.extract_strided_slice %416 {offsets = [0, 0], sizes = [1, 16], strides = [1, 1]} : vector<8x16xf32> to vector<1x16xf32>
    %428 = vector.broadcast %421 : vector<1x1xf32> to vector<1x16xf32>
    %429 = arith.mulf %427, %428 : vector<1x16xf32>
    %c0_i32_47 = arith.constant 0 : i32
    %430 = vector.broadcast %c0_i32_47 : i32 to vector<8x1xi32>
    %431 = arith.cmpi eq, %6, %430 : vector<8x1xi32>
    %432 = vector.extract_strided_slice %418 {offsets = [0, 0], sizes = [8, 1], strides = [1, 1]} : vector<8x8xf32> to vector<8x1xf32>
    %433 = vector.broadcast %432 : vector<8x1xf32> to vector<8x8xf32>
    %434 = vector.broadcast %424 : vector<1x8xf32> to vector<8x8xf32>
    %435 = arith.mulf %433, %434 : vector<8x8xf32>
    %436 = arith.subf %418, %435 : vector<8x8xf32>
    %437 = vector.shape_cast %431 : vector<8x1xi1> to vector<8x1xi1>
    %438 = vector.broadcast %437 : vector<8x1xi1> to vector<8x8xi1>
    %439 = vector.shape_cast %424 : vector<1x8xf32> to vector<1x8xf32>
    %440 = vector.broadcast %439 : vector<1x8xf32> to vector<8x8xf32>
    %441 = arith.select %438, %440, %436 : vector<8x8xi1>, vector<8x8xf32>
    %442 = vector.broadcast %426 : vector<1x1xf32> to vector<8x1xf32>
    %443 = arith.mulf %432, %442 : vector<8x1xf32>
    %444 = arith.subf %380, %443 : vector<8x1xf32>
    %445 = vector.shape_cast %426 : vector<1x1xf32> to vector<1x1xf32>
    %446 = vector.broadcast %445 : vector<1x1xf32> to vector<8x1xf32>
    %447 = arith.select %431, %446, %444 : vector<8x1xi1>, vector<8x1xf32>
    %448 = vector.broadcast %432 : vector<8x1xf32> to vector<8x16xf32>
    %449 = vector.broadcast %429 : vector<1x16xf32> to vector<8x16xf32>
    %450 = arith.mulf %448, %449 : vector<8x16xf32>
    %451 = arith.subf %416, %450 : vector<8x16xf32>
    %452 = vector.shape_cast %431 : vector<8x1xi1> to vector<8x1xi1>
    %453 = vector.broadcast %452 : vector<8x1xi1> to vector<8x16xi1>
    %454 = vector.shape_cast %429 : vector<1x16xf32> to vector<1x16xf32>
    %455 = vector.broadcast %454 : vector<1x16xf32> to vector<8x16xf32>
    %456 = arith.select %453, %455, %451 : vector<8x16xi1>, vector<8x16xf32>
    %457 = vector.extract_strided_slice %441 {offsets = [1, 1], sizes = [1, 1], strides = [1, 1]} : vector<8x8xf32> to vector<1x1xf32>
    %cst_48 = arith.constant 1.000000e+00 : f32
    %458 = vector.broadcast %cst_48 : f32 to vector<1x1xf32>
    %459 = arith.divf %458, %457 : vector<1x1xf32>
    %460 = vector.extract_strided_slice %441 {offsets = [1, 0], sizes = [1, 8], strides = [1, 1]} : vector<8x8xf32> to vector<1x8xf32>
    %461 = vector.broadcast %459 : vector<1x1xf32> to vector<1x8xf32>
    %462 = arith.mulf %460, %461 : vector<1x8xf32>
    %463 = vector.extract_strided_slice %447 {offsets = [1, 0], sizes = [1, 1], strides = [1, 1]} : vector<8x1xf32> to vector<1x1xf32>
    %464 = arith.mulf %463, %459 : vector<1x1xf32>
    %465 = vector.extract_strided_slice %456 {offsets = [1, 0], sizes = [1, 16], strides = [1, 1]} : vector<8x16xf32> to vector<1x16xf32>
    %466 = vector.broadcast %459 : vector<1x1xf32> to vector<1x16xf32>
    %467 = arith.mulf %465, %466 : vector<1x16xf32>
    %c1_i32_49 = arith.constant 1 : i32
    %468 = vector.broadcast %c1_i32_49 : i32 to vector<8x1xi32>
    %469 = arith.cmpi eq, %6, %468 : vector<8x1xi32>
    %470 = vector.extract_strided_slice %441 {offsets = [0, 1], sizes = [8, 1], strides = [1, 1]} : vector<8x8xf32> to vector<8x1xf32>
    %471 = vector.broadcast %470 : vector<8x1xf32> to vector<8x8xf32>
    %472 = vector.broadcast %462 : vector<1x8xf32> to vector<8x8xf32>
    %473 = arith.mulf %471, %472 : vector<8x8xf32>
    %474 = arith.subf %441, %473 : vector<8x8xf32>
    %475 = vector.shape_cast %469 : vector<8x1xi1> to vector<8x1xi1>
    %476 = vector.broadcast %475 : vector<8x1xi1> to vector<8x8xi1>
    %477 = vector.shape_cast %462 : vector<1x8xf32> to vector<1x8xf32>
    %478 = vector.broadcast %477 : vector<1x8xf32> to vector<8x8xf32>
    %479 = arith.select %476, %478, %474 : vector<8x8xi1>, vector<8x8xf32>
    %480 = vector.broadcast %464 : vector<1x1xf32> to vector<8x1xf32>
    %481 = arith.mulf %470, %480 : vector<8x1xf32>
    %482 = arith.subf %447, %481 : vector<8x1xf32>
    %483 = vector.shape_cast %464 : vector<1x1xf32> to vector<1x1xf32>
    %484 = vector.broadcast %483 : vector<1x1xf32> to vector<8x1xf32>
    %485 = arith.select %469, %484, %482 : vector<8x1xi1>, vector<8x1xf32>
    %486 = vector.broadcast %470 : vector<8x1xf32> to vector<8x16xf32>
    %487 = vector.broadcast %467 : vector<1x16xf32> to vector<8x16xf32>
    %488 = arith.mulf %486, %487 : vector<8x16xf32>
    %489 = arith.subf %456, %488 : vector<8x16xf32>
    %490 = vector.shape_cast %469 : vector<8x1xi1> to vector<8x1xi1>
    %491 = vector.broadcast %490 : vector<8x1xi1> to vector<8x16xi1>
    %492 = vector.shape_cast %467 : vector<1x16xf32> to vector<1x16xf32>
    %493 = vector.broadcast %492 : vector<1x16xf32> to vector<8x16xf32>
    %494 = arith.select %491, %493, %489 : vector<8x16xi1>, vector<8x16xf32>
    %495 = vector.extract_strided_slice %479 {offsets = [2, 2], sizes = [1, 1], strides = [1, 1]} : vector<8x8xf32> to vector<1x1xf32>
    %cst_50 = arith.constant 1.000000e+00 : f32
    %496 = vector.broadcast %cst_50 : f32 to vector<1x1xf32>
    %497 = arith.divf %496, %495 : vector<1x1xf32>
    %498 = vector.extract_strided_slice %479 {offsets = [2, 0], sizes = [1, 8], strides = [1, 1]} : vector<8x8xf32> to vector<1x8xf32>
    %499 = vector.broadcast %497 : vector<1x1xf32> to vector<1x8xf32>
    %500 = arith.mulf %498, %499 : vector<1x8xf32>
    %501 = vector.extract_strided_slice %485 {offsets = [2, 0], sizes = [1, 1], strides = [1, 1]} : vector<8x1xf32> to vector<1x1xf32>
    %502 = arith.mulf %501, %497 : vector<1x1xf32>
    %503 = vector.extract_strided_slice %494 {offsets = [2, 0], sizes = [1, 16], strides = [1, 1]} : vector<8x16xf32> to vector<1x16xf32>
    %504 = vector.broadcast %497 : vector<1x1xf32> to vector<1x16xf32>
    %505 = arith.mulf %503, %504 : vector<1x16xf32>
    %c2_i32_51 = arith.constant 2 : i32
    %506 = vector.broadcast %c2_i32_51 : i32 to vector<8x1xi32>
    %507 = arith.cmpi eq, %6, %506 : vector<8x1xi32>
    %508 = vector.extract_strided_slice %479 {offsets = [0, 2], sizes = [8, 1], strides = [1, 1]} : vector<8x8xf32> to vector<8x1xf32>
    %509 = vector.broadcast %508 : vector<8x1xf32> to vector<8x8xf32>
    %510 = vector.broadcast %500 : vector<1x8xf32> to vector<8x8xf32>
    %511 = arith.mulf %509, %510 : vector<8x8xf32>
    %512 = arith.subf %479, %511 : vector<8x8xf32>
    %513 = vector.shape_cast %507 : vector<8x1xi1> to vector<8x1xi1>
    %514 = vector.broadcast %513 : vector<8x1xi1> to vector<8x8xi1>
    %515 = vector.shape_cast %500 : vector<1x8xf32> to vector<1x8xf32>
    %516 = vector.broadcast %515 : vector<1x8xf32> to vector<8x8xf32>
    %517 = arith.select %514, %516, %512 : vector<8x8xi1>, vector<8x8xf32>
    %518 = vector.broadcast %502 : vector<1x1xf32> to vector<8x1xf32>
    %519 = arith.mulf %508, %518 : vector<8x1xf32>
    %520 = arith.subf %485, %519 : vector<8x1xf32>
    %521 = vector.shape_cast %502 : vector<1x1xf32> to vector<1x1xf32>
    %522 = vector.broadcast %521 : vector<1x1xf32> to vector<8x1xf32>
    %523 = arith.select %507, %522, %520 : vector<8x1xi1>, vector<8x1xf32>
    %524 = vector.broadcast %508 : vector<8x1xf32> to vector<8x16xf32>
    %525 = vector.broadcast %505 : vector<1x16xf32> to vector<8x16xf32>
    %526 = arith.mulf %524, %525 : vector<8x16xf32>
    %527 = arith.subf %494, %526 : vector<8x16xf32>
    %528 = vector.shape_cast %507 : vector<8x1xi1> to vector<8x1xi1>
    %529 = vector.broadcast %528 : vector<8x1xi1> to vector<8x16xi1>
    %530 = vector.shape_cast %505 : vector<1x16xf32> to vector<1x16xf32>
    %531 = vector.broadcast %530 : vector<1x16xf32> to vector<8x16xf32>
    %532 = arith.select %529, %531, %527 : vector<8x16xi1>, vector<8x16xf32>
    %533 = vector.extract_strided_slice %517 {offsets = [3, 3], sizes = [1, 1], strides = [1, 1]} : vector<8x8xf32> to vector<1x1xf32>
    %cst_52 = arith.constant 1.000000e+00 : f32
    %534 = vector.broadcast %cst_52 : f32 to vector<1x1xf32>
    %535 = arith.divf %534, %533 : vector<1x1xf32>
    %536 = vector.extract_strided_slice %517 {offsets = [3, 0], sizes = [1, 8], strides = [1, 1]} : vector<8x8xf32> to vector<1x8xf32>
    %537 = vector.broadcast %535 : vector<1x1xf32> to vector<1x8xf32>
    %538 = arith.mulf %536, %537 : vector<1x8xf32>
    %539 = vector.extract_strided_slice %523 {offsets = [3, 0], sizes = [1, 1], strides = [1, 1]} : vector<8x1xf32> to vector<1x1xf32>
    %540 = arith.mulf %539, %535 : vector<1x1xf32>
    %541 = vector.extract_strided_slice %532 {offsets = [3, 0], sizes = [1, 16], strides = [1, 1]} : vector<8x16xf32> to vector<1x16xf32>
    %542 = vector.broadcast %535 : vector<1x1xf32> to vector<1x16xf32>
    %543 = arith.mulf %541, %542 : vector<1x16xf32>
    %c3_i32_53 = arith.constant 3 : i32
    %544 = vector.broadcast %c3_i32_53 : i32 to vector<8x1xi32>
    %545 = arith.cmpi eq, %6, %544 : vector<8x1xi32>
    %546 = vector.extract_strided_slice %517 {offsets = [0, 3], sizes = [8, 1], strides = [1, 1]} : vector<8x8xf32> to vector<8x1xf32>
    %547 = vector.broadcast %546 : vector<8x1xf32> to vector<8x8xf32>
    %548 = vector.broadcast %538 : vector<1x8xf32> to vector<8x8xf32>
    %549 = arith.mulf %547, %548 : vector<8x8xf32>
    %550 = arith.subf %517, %549 : vector<8x8xf32>
    %551 = vector.shape_cast %545 : vector<8x1xi1> to vector<8x1xi1>
    %552 = vector.broadcast %551 : vector<8x1xi1> to vector<8x8xi1>
    %553 = vector.shape_cast %538 : vector<1x8xf32> to vector<1x8xf32>
    %554 = vector.broadcast %553 : vector<1x8xf32> to vector<8x8xf32>
    %555 = arith.select %552, %554, %550 : vector<8x8xi1>, vector<8x8xf32>
    %556 = vector.broadcast %540 : vector<1x1xf32> to vector<8x1xf32>
    %557 = arith.mulf %546, %556 : vector<8x1xf32>
    %558 = arith.subf %523, %557 : vector<8x1xf32>
    %559 = vector.shape_cast %540 : vector<1x1xf32> to vector<1x1xf32>
    %560 = vector.broadcast %559 : vector<1x1xf32> to vector<8x1xf32>
    %561 = arith.select %545, %560, %558 : vector<8x1xi1>, vector<8x1xf32>
    %562 = vector.broadcast %546 : vector<8x1xf32> to vector<8x16xf32>
    %563 = vector.broadcast %543 : vector<1x16xf32> to vector<8x16xf32>
    %564 = arith.mulf %562, %563 : vector<8x16xf32>
    %565 = arith.subf %532, %564 : vector<8x16xf32>
    %566 = vector.shape_cast %545 : vector<8x1xi1> to vector<8x1xi1>
    %567 = vector.broadcast %566 : vector<8x1xi1> to vector<8x16xi1>
    %568 = vector.shape_cast %543 : vector<1x16xf32> to vector<1x16xf32>
    %569 = vector.broadcast %568 : vector<1x16xf32> to vector<8x16xf32>
    %570 = arith.select %567, %569, %565 : vector<8x16xi1>, vector<8x16xf32>
    %571 = vector.extract_strided_slice %555 {offsets = [4, 4], sizes = [1, 1], strides = [1, 1]} : vector<8x8xf32> to vector<1x1xf32>
    %cst_54 = arith.constant 1.000000e+00 : f32
    %572 = vector.broadcast %cst_54 : f32 to vector<1x1xf32>
    %573 = arith.divf %572, %571 : vector<1x1xf32>
    %574 = vector.extract_strided_slice %555 {offsets = [4, 0], sizes = [1, 8], strides = [1, 1]} : vector<8x8xf32> to vector<1x8xf32>
    %575 = vector.broadcast %573 : vector<1x1xf32> to vector<1x8xf32>
    %576 = arith.mulf %574, %575 : vector<1x8xf32>
    %577 = vector.extract_strided_slice %561 {offsets = [4, 0], sizes = [1, 1], strides = [1, 1]} : vector<8x1xf32> to vector<1x1xf32>
    %578 = arith.mulf %577, %573 : vector<1x1xf32>
    %579 = vector.extract_strided_slice %570 {offsets = [4, 0], sizes = [1, 16], strides = [1, 1]} : vector<8x16xf32> to vector<1x16xf32>
    %580 = vector.broadcast %573 : vector<1x1xf32> to vector<1x16xf32>
    %581 = arith.mulf %579, %580 : vector<1x16xf32>
    %c4_i32_55 = arith.constant 4 : i32
    %582 = vector.broadcast %c4_i32_55 : i32 to vector<8x1xi32>
    %583 = arith.cmpi eq, %6, %582 : vector<8x1xi32>
    %584 = vector.extract_strided_slice %555 {offsets = [0, 4], sizes = [8, 1], strides = [1, 1]} : vector<8x8xf32> to vector<8x1xf32>
    %585 = vector.broadcast %584 : vector<8x1xf32> to vector<8x8xf32>
    %586 = vector.broadcast %576 : vector<1x8xf32> to vector<8x8xf32>
    %587 = arith.mulf %585, %586 : vector<8x8xf32>
    %588 = arith.subf %555, %587 : vector<8x8xf32>
    %589 = vector.shape_cast %583 : vector<8x1xi1> to vector<8x1xi1>
    %590 = vector.broadcast %589 : vector<8x1xi1> to vector<8x8xi1>
    %591 = vector.shape_cast %576 : vector<1x8xf32> to vector<1x8xf32>
    %592 = vector.broadcast %591 : vector<1x8xf32> to vector<8x8xf32>
    %593 = arith.select %590, %592, %588 : vector<8x8xi1>, vector<8x8xf32>
    %594 = vector.broadcast %578 : vector<1x1xf32> to vector<8x1xf32>
    %595 = arith.mulf %584, %594 : vector<8x1xf32>
    %596 = arith.subf %561, %595 : vector<8x1xf32>
    %597 = vector.shape_cast %578 : vector<1x1xf32> to vector<1x1xf32>
    %598 = vector.broadcast %597 : vector<1x1xf32> to vector<8x1xf32>
    %599 = arith.select %583, %598, %596 : vector<8x1xi1>, vector<8x1xf32>
    %600 = vector.broadcast %584 : vector<8x1xf32> to vector<8x16xf32>
    %601 = vector.broadcast %581 : vector<1x16xf32> to vector<8x16xf32>
    %602 = arith.mulf %600, %601 : vector<8x16xf32>
    %603 = arith.subf %570, %602 : vector<8x16xf32>
    %604 = vector.shape_cast %583 : vector<8x1xi1> to vector<8x1xi1>
    %605 = vector.broadcast %604 : vector<8x1xi1> to vector<8x16xi1>
    %606 = vector.shape_cast %581 : vector<1x16xf32> to vector<1x16xf32>
    %607 = vector.broadcast %606 : vector<1x16xf32> to vector<8x16xf32>
    %608 = arith.select %605, %607, %603 : vector<8x16xi1>, vector<8x16xf32>
    %609 = vector.extract_strided_slice %593 {offsets = [5, 5], sizes = [1, 1], strides = [1, 1]} : vector<8x8xf32> to vector<1x1xf32>
    %cst_56 = arith.constant 1.000000e+00 : f32
    %610 = vector.broadcast %cst_56 : f32 to vector<1x1xf32>
    %611 = arith.divf %610, %609 : vector<1x1xf32>
    %612 = vector.extract_strided_slice %593 {offsets = [5, 0], sizes = [1, 8], strides = [1, 1]} : vector<8x8xf32> to vector<1x8xf32>
    %613 = vector.broadcast %611 : vector<1x1xf32> to vector<1x8xf32>
    %614 = arith.mulf %612, %613 : vector<1x8xf32>
    %615 = vector.extract_strided_slice %599 {offsets = [5, 0], sizes = [1, 1], strides = [1, 1]} : vector<8x1xf32> to vector<1x1xf32>
    %616 = arith.mulf %615, %611 : vector<1x1xf32>
    %617 = vector.extract_strided_slice %608 {offsets = [5, 0], sizes = [1, 16], strides = [1, 1]} : vector<8x16xf32> to vector<1x16xf32>
    %618 = vector.broadcast %611 : vector<1x1xf32> to vector<1x16xf32>
    %619 = arith.mulf %617, %618 : vector<1x16xf32>
    %c5_i32_57 = arith.constant 5 : i32
    %620 = vector.broadcast %c5_i32_57 : i32 to vector<8x1xi32>
    %621 = arith.cmpi eq, %6, %620 : vector<8x1xi32>
    %622 = vector.extract_strided_slice %593 {offsets = [0, 5], sizes = [8, 1], strides = [1, 1]} : vector<8x8xf32> to vector<8x1xf32>
    %623 = vector.broadcast %622 : vector<8x1xf32> to vector<8x8xf32>
    %624 = vector.broadcast %614 : vector<1x8xf32> to vector<8x8xf32>
    %625 = arith.mulf %623, %624 : vector<8x8xf32>
    %626 = arith.subf %593, %625 : vector<8x8xf32>
    %627 = vector.shape_cast %621 : vector<8x1xi1> to vector<8x1xi1>
    %628 = vector.broadcast %627 : vector<8x1xi1> to vector<8x8xi1>
    %629 = vector.shape_cast %614 : vector<1x8xf32> to vector<1x8xf32>
    %630 = vector.broadcast %629 : vector<1x8xf32> to vector<8x8xf32>
    %631 = arith.select %628, %630, %626 : vector<8x8xi1>, vector<8x8xf32>
    %632 = vector.broadcast %616 : vector<1x1xf32> to vector<8x1xf32>
    %633 = arith.mulf %622, %632 : vector<8x1xf32>
    %634 = arith.subf %599, %633 : vector<8x1xf32>
    %635 = vector.shape_cast %616 : vector<1x1xf32> to vector<1x1xf32>
    %636 = vector.broadcast %635 : vector<1x1xf32> to vector<8x1xf32>
    %637 = arith.select %621, %636, %634 : vector<8x1xi1>, vector<8x1xf32>
    %638 = vector.broadcast %622 : vector<8x1xf32> to vector<8x16xf32>
    %639 = vector.broadcast %619 : vector<1x16xf32> to vector<8x16xf32>
    %640 = arith.mulf %638, %639 : vector<8x16xf32>
    %641 = arith.subf %608, %640 : vector<8x16xf32>
    %642 = vector.shape_cast %621 : vector<8x1xi1> to vector<8x1xi1>
    %643 = vector.broadcast %642 : vector<8x1xi1> to vector<8x16xi1>
    %644 = vector.shape_cast %619 : vector<1x16xf32> to vector<1x16xf32>
    %645 = vector.broadcast %644 : vector<1x16xf32> to vector<8x16xf32>
    %646 = arith.select %643, %645, %641 : vector<8x16xi1>, vector<8x16xf32>
    %647 = vector.extract_strided_slice %631 {offsets = [6, 6], sizes = [1, 1], strides = [1, 1]} : vector<8x8xf32> to vector<1x1xf32>
    %cst_58 = arith.constant 1.000000e+00 : f32
    %648 = vector.broadcast %cst_58 : f32 to vector<1x1xf32>
    %649 = arith.divf %648, %647 : vector<1x1xf32>
    %650 = vector.extract_strided_slice %631 {offsets = [6, 0], sizes = [1, 8], strides = [1, 1]} : vector<8x8xf32> to vector<1x8xf32>
    %651 = vector.broadcast %649 : vector<1x1xf32> to vector<1x8xf32>
    %652 = arith.mulf %650, %651 : vector<1x8xf32>
    %653 = vector.extract_strided_slice %637 {offsets = [6, 0], sizes = [1, 1], strides = [1, 1]} : vector<8x1xf32> to vector<1x1xf32>
    %654 = arith.mulf %653, %649 : vector<1x1xf32>
    %655 = vector.extract_strided_slice %646 {offsets = [6, 0], sizes = [1, 16], strides = [1, 1]} : vector<8x16xf32> to vector<1x16xf32>
    %656 = vector.broadcast %649 : vector<1x1xf32> to vector<1x16xf32>
    %657 = arith.mulf %655, %656 : vector<1x16xf32>
    %c6_i32_59 = arith.constant 6 : i32
    %658 = vector.broadcast %c6_i32_59 : i32 to vector<8x1xi32>
    %659 = arith.cmpi eq, %6, %658 : vector<8x1xi32>
    %660 = vector.extract_strided_slice %631 {offsets = [0, 6], sizes = [8, 1], strides = [1, 1]} : vector<8x8xf32> to vector<8x1xf32>
    %661 = vector.broadcast %660 : vector<8x1xf32> to vector<8x8xf32>
    %662 = vector.broadcast %652 : vector<1x8xf32> to vector<8x8xf32>
    %663 = arith.mulf %661, %662 : vector<8x8xf32>
    %664 = arith.subf %631, %663 : vector<8x8xf32>
    %665 = vector.shape_cast %659 : vector<8x1xi1> to vector<8x1xi1>
    %666 = vector.broadcast %665 : vector<8x1xi1> to vector<8x8xi1>
    %667 = vector.shape_cast %652 : vector<1x8xf32> to vector<1x8xf32>
    %668 = vector.broadcast %667 : vector<1x8xf32> to vector<8x8xf32>
    %669 = arith.select %666, %668, %664 : vector<8x8xi1>, vector<8x8xf32>
    %670 = vector.broadcast %654 : vector<1x1xf32> to vector<8x1xf32>
    %671 = arith.mulf %660, %670 : vector<8x1xf32>
    %672 = arith.subf %637, %671 : vector<8x1xf32>
    %673 = vector.shape_cast %654 : vector<1x1xf32> to vector<1x1xf32>
    %674 = vector.broadcast %673 : vector<1x1xf32> to vector<8x1xf32>
    %675 = arith.select %659, %674, %672 : vector<8x1xi1>, vector<8x1xf32>
    %676 = vector.broadcast %660 : vector<8x1xf32> to vector<8x16xf32>
    %677 = vector.broadcast %657 : vector<1x16xf32> to vector<8x16xf32>
    %678 = arith.mulf %676, %677 : vector<8x16xf32>
    %679 = arith.subf %646, %678 : vector<8x16xf32>
    %680 = vector.shape_cast %659 : vector<8x1xi1> to vector<8x1xi1>
    %681 = vector.broadcast %680 : vector<8x1xi1> to vector<8x16xi1>
    %682 = vector.shape_cast %657 : vector<1x16xf32> to vector<1x16xf32>
    %683 = vector.broadcast %682 : vector<1x16xf32> to vector<8x16xf32>
    %684 = arith.select %681, %683, %679 : vector<8x16xi1>, vector<8x16xf32>
    %685 = vector.extract_strided_slice %669 {offsets = [7, 7], sizes = [1, 1], strides = [1, 1]} : vector<8x8xf32> to vector<1x1xf32>
    %cst_60 = arith.constant 1.000000e+00 : f32
    %686 = vector.broadcast %cst_60 : f32 to vector<1x1xf32>
    %687 = arith.divf %686, %685 : vector<1x1xf32>
    %688 = vector.extract_strided_slice %675 {offsets = [7, 0], sizes = [1, 1], strides = [1, 1]} : vector<8x1xf32> to vector<1x1xf32>
    %689 = arith.mulf %688, %687 : vector<1x1xf32>
    %690 = vector.extract_strided_slice %684 {offsets = [7, 0], sizes = [1, 16], strides = [1, 1]} : vector<8x16xf32> to vector<1x16xf32>
    %691 = vector.broadcast %687 : vector<1x1xf32> to vector<1x16xf32>
    %692 = arith.mulf %690, %691 : vector<1x16xf32>
    %c7_i32_61 = arith.constant 7 : i32
    %693 = vector.broadcast %c7_i32_61 : i32 to vector<8x1xi32>
    %694 = arith.cmpi eq, %6, %693 : vector<8x1xi32>
    %695 = vector.extract_strided_slice %669 {offsets = [0, 7], sizes = [8, 1], strides = [1, 1]} : vector<8x8xf32> to vector<8x1xf32>
    %696 = vector.broadcast %689 : vector<1x1xf32> to vector<8x1xf32>
    %697 = arith.mulf %695, %696 : vector<8x1xf32>
    %698 = arith.subf %675, %697 : vector<8x1xf32>
    %699 = vector.shape_cast %689 : vector<1x1xf32> to vector<1x1xf32>
    %700 = vector.broadcast %699 : vector<1x1xf32> to vector<8x1xf32>
    %701 = arith.select %694, %700, %698 : vector<8x1xi1>, vector<8x1xf32>
    %702 = vector.broadcast %695 : vector<8x1xf32> to vector<8x16xf32>
    %703 = vector.broadcast %692 : vector<1x16xf32> to vector<8x16xf32>
    %704 = arith.mulf %702, %703 : vector<8x16xf32>
    %705 = arith.subf %684, %704 : vector<8x16xf32>
    %706 = vector.shape_cast %694 : vector<8x1xi1> to vector<8x1xi1>
    %707 = vector.broadcast %706 : vector<8x1xi1> to vector<8x16xi1>
    %708 = vector.shape_cast %692 : vector<1x16xf32> to vector<1x16xf32>
    %709 = vector.broadcast %708 : vector<1x16xf32> to vector<8x16xf32>
    %710 = arith.select %707, %709, %705 : vector<8x16xi1>, vector<8x16xf32>
    %711 = vector.broadcast %701 : vector<8x1xf32> to vector<8x16xf32>
    %712 = arith.mulf %711, %416 : vector<8x16xf32>
    %cst_62 = arith.constant dense<0.000000e+00> : vector<16xf32>
    %713 = vector.multi_reduction <add>, %712, %cst_62 [0] : vector<8x16xf32> to vector<16xf32>
    %714 = vector.shape_cast %713 : vector<16xf32> to vector<1x16xf32>
    %715 = arith.mulf %710, %416 : vector<8x16xf32>
    %cst_63 = arith.constant dense<0.000000e+00> : vector<16xf32>
    %716 = vector.multi_reduction <add>, %715, %cst_63 [0] : vector<8x16xf32> to vector<16xf32>
    %717 = vector.shape_cast %716 : vector<16xf32> to vector<1x16xf32>
    %cst_64 = arith.constant 1.100000e+00 : f32
    %718 = vector.broadcast %cst_64 : f32 to vector<1x16xf32>
    %719 = arith.subf %718, %717 : vector<1x16xf32>
    %cst_65 = arith.constant 9.99999996E-13 : f32
    %720 = vector.broadcast %cst_65 : f32 to vector<1x16xf32>
    %721 = arith.maximumf %719, %720 : vector<1x16xf32>
    %722 = math.sqrt %721 : vector<1x16xf32>
    %cst_66 = arith.constant 2.000000e+00 : f32
    %723 = vector.broadcast %cst_66 : f32 to vector<1x16xf32>
    %724 = arith.mulf %723, %722 : vector<1x16xf32>
    %725 = vector.broadcast %16 : vector<3x1xf32> to vector<3x16xf32>
    %726 = vector.broadcast %724 : vector<1x16xf32> to vector<3x16xf32>
    %727 = arith.mulf %725, %726 : vector<3x16xf32>
    %728 = vector.broadcast %714 : vector<1x16xf32> to vector<3x16xf32>
    %729 = arith.addf %728, %727 : vector<3x16xf32>
    %c1_67 = arith.constant 1 : index
    %c0_68 = arith.constant 0 : index
    %c0_69 = arith.constant 0 : index
    %730 = vector.load %arg3[%c1_67, %c0_68, %c0_69] : memref<2x3x16xf32, #tpu.memory_space<vmem>>, vector<1x3x16xf32>
    %731 = vector.shape_cast %730 : vector<1x3x16xf32> to vector<3x16xf32>
    %732 = vector.shape_cast %729 : vector<3x16xf32> to vector<1x3x16xf32>
    tpu.vector_store %arg3[%c1_67, %c0_68, %c0_69], %732 {strides = array<i32>} : memref<2x3x16xf32, #tpu.memory_space<vmem>>, vector<1x3x16xf32>,
    return
  }
}

</mosaic_0001>

<llo_original>
// kernel: regression_encoder_gp_forward.1
$region0: #{regression_encoder_gp_forward.1}
  #allocation0 [shape = 'u32[]', space=smem, size = 0x4, offset = 0x4, fixed_abs, tag = 'smem constant byte address 0x4 - core index']
  #allocation1 [shape = 'u32[144,128]{1,0:T(1,128)}', space=vmem, size = 0x12000, scoped, tag = 'internal scratch']
  %s0 = inlined_call_operand.vmem [shape: f32[2,8,4], index: 0, kind: input, shape index: {}]
  %s1 = inlined_call_operand.vmem [shape: f32[2,4,16], index: 1, kind: input, shape index: {}]
  %s2 = inlined_call_operand.vmem [shape: f32[2,8,1], index: 2, kind: input, shape index: {}]
  %s3 = inlined_call_operand.vmem [shape: f32[2,3,16], index: 3, kind: output, shape index: {}]
  %s4 = sld [smem:[#allocation0]]
  $region22: #{regression_encoder_gp_forward.1} parent=0
    _
  %s6 = ssub.s32 1, %s4
  %s7 = scalar_select 0, %s6, %s4
  // Predicated region
  $region2: #{regression_encoder_gp_forward.1} parent=0 // pred_check
    _
  $region3: #{regression_encoder_gp_forward.1} parent=0 // pred_check_branch
    %9 = sbr.rel (0) target = $region5
  $region4: #{regression_encoder_gp_forward.1} parent=0 // pred_region
    _
  $region5: #{regression_encoder_gp_forward.1} parent=0 // pred_fallthru
    _
  // Predicated region
  $region6: #{regression_encoder_gp_forward.1} parent=0 // pred_check
    _
  $region7: #{regression_encoder_gp_forward.1} parent=0 // pred_check_branch
    %11 = sbr.rel (0) target = $region9
  $region8: #{regression_encoder_gp_forward.1} parent=0 // pred_region
    _
  $region9: #{regression_encoder_gp_forward.1} parent=0 // pred_fallthru
    _
  // Predicated region
  $region10: #{regression_encoder_gp_forward.1} parent=0 // pred_check
    _
  $region11: #{regression_encoder_gp_forward.1} parent=0 // pred_check_branch
    %13 = sbr.rel (0) target = $region13
  $region12: #{regression_encoder_gp_forward.1} parent=0 // pred_region
    _
  $region13: #{regression_encoder_gp_forward.1} parent=0 // pred_fallthru
    _
  %v14 = vlaneseq
  %v15 = vshrl.u32 %v14, 7
  %v16 = vlaneseq
  %v17 = vand.u32 %v16, 127
  %vm18 = vcmp.eq.s32.totalorder %v15, %v17
  %v19 = vsel %vm18, 0.1, 0.0
  %vm20 = vcmp.eq.s32.totalorder %v15, 0
  %vm21 = vcmp.eq.s32.totalorder %v15, 1
  %v22 = vsel %vm21, -1.0, 1.0
  %v23 = vsel %vm20, 0.0, %v22
  %v24 = vld [vmem:[%s0] sm:$0xff]
  %v25 = vld [vmem:[%s1] sm:$0xf]
  %v26 = vld [vmem:[%s2] sm:$0xff]
  %28 = vset.pattern.permute.xlu0 0
  %29 = vperm.xlu0 %28, %v24
  %v30 = vpop.permute.xlu0 %29
  %v32 = vlaneseq
  %v33 = vshrl.u32 %v32, 7
  %v34 = vsub.s32 0, %v33
  %v35 = vrot.slane %v25, %v34
  %v36 = vsub.f32 %v30, %v35
  %v37 = vmul.f32 %v36, %v36
  %v38 = vadd.f32 %v37, 0.0
  %39 = vset.pattern.permute.xlu0 1
  %40 = vperm.xlu0 %39, %v24
  %v41 = vpop.permute.xlu0 %40
  %v43 = vlaneseq
  %v44 = vshrl.u32 %v43, 7
  %v45 = vsub.s32 1, %v44
  %v46 = vrot.slane %v25, %v45
  %v47 = vsub.f32 %v41, %v46
  %v48 = vmul.f32 %v47, %v47
  %v49 = vadd.f32 %v38, %v48
  %50 = vset.pattern.permute.xlu0 2
  %51 = vperm.xlu0 %50, %v24
  %v52 = vpop.permute.xlu0 %51
  %v54 = vlaneseq
  %v55 = vshrl.u32 %v54, 7
  %v56 = vsub.s32 2, %v55
  %v57 = vrot.slane %v25, %v56
  %v58 = vsub.f32 %v52, %v57
  %v59 = vmul.f32 %v58, %v58
  %v60 = vadd.f32 %v49, %v59
  %61 = vset.pattern.permute.xlu0 3
  %62 = vperm.xlu0 %61, %v24
  %v63 = vpop.permute.xlu0 %62
  %v65 = vlaneseq
  %v66 = vshrl.u32 %v65, 7
  %v67 = vsub.s32 3, %v66
  %v68 = vrot.slane %v25, %v67
  %v69 = vsub.f32 %v63, %v68
  %v70 = vmul.f32 %v69, %v69
  %v71 = vadd.f32 %v60, %v70
  %v72 = vsub.f32 0.0, %v71
  %v73 = vmul.f32 %v72, 0.5
  %v74 = vmul.f32 %v73, 1.442695
  %v75 = vpow.pop %v74
  %v76 = vadd.f32 %v75, %v19
  %v77 = vrcp.pop %v76
  %v78 = vmul.f32 1.0, %v77
  %80 = vset.pattern.permute.xlu0 0
  %81 = vperm.xlu0 %80, %v78
  %v82 = vpop.permute.xlu0 %81
  %v84 = vmul.f32 %v76, %v82
  %v85 = vmul.f32 %v26, %v78
  %v86 = vmul.f32 %v75, %v82
  %88 = vset.pattern.permute.xlu0 0
  %89 = vperm.xlu0 %88, %v76
  %v90 = vpop.permute.xlu0 %89
  %v92 = vlaneseq
  %v93 = vshrl.u32 %v92, 7
  %v94 = vsub.s32 0, %v93
  %v95 = vrot.slane %v84, %v94
  %v96 = vmul.f32 %v90, %v95
  %v97 = vsub.f32 %v76, %v96
  %v98 = vsel %vm20, 1, 0
  %vm99 = vcmp.eq.s32.totalorder %v98, 1
  %v100 = vsel %vm99, %v95, %v97
  %v101 = vlaneseq
  %v102 = vshrl.u32 %v101, 7
  %v103 = vsub.s32 0, %v102
  %v104 = vrot.slane %v85, %v103
  %v105 = vmul.f32 %v76, %v104
  %v106 = vsub.f32 %v26, %v105
  %v107 = vsel %vm20, %v104, %v106
  %v108 = vlaneseq
  %v109 = vshrl.u32 %v108, 7
  %v110 = vsub.s32 0, %v109
  %v111 = vrot.slane %v86, %v110
  %v112 = vmul.f32 %v90, %v111
  %v113 = vsub.f32 %v75, %v112
  %v114 = vsel %vm99, %v111, %v113
  %v115 = vrcp.pop %v100
  %v116 = vmul.f32 1.0, %v115
  %118 = vset.pattern.permute.xlu0 1
  %119 = vperm.xlu0 %118, %v116
  %v120 = vpop.permute.xlu0 %119
  %v122 = vmul.f32 %v100, %v120
  %123 = vrot.lane.b32.xlu0 %v116, 127
  %v124 = vpop.permute.xlu0 %123
  %v126 = vmul.f32 %v107, %v124
  %v127 = vmul.f32 %v114, %v120
  %129 = vset.pattern.permute.xlu0 1
  %130 = vperm.xlu0 %129, %v100
  %v131 = vpop.permute.xlu0 %130
  %v133 = vlaneseq
  %v134 = vshrl.u32 %v133, 7
  %v135 = vsub.s32 1, %v134
  %v136 = vrot.slane %v122, %v135
  %v137 = vmul.f32 %v131, %v136
  %v138 = vsub.f32 %v100, %v137
  %v139 = vsel %vm21, 1, 0
  %vm140 = vcmp.eq.s32.totalorder %v139, 1
  %v141 = vsel %vm140, %v136, %v138
  %v142 = vlaneseq
  %v143 = vshrl.u32 %v142, 7
  %v144 = vsub.s32 1, %v143
  %v145 = vrot.slane %v126, %v144
  %147 = vrot.lane.b32.xlu0 %v145, 1
  %v148 = vpop.permute.xlu0 %147
  %v150 = vmul.f32 %v100, %v148
  %152 = vrot.lane.b32.xlu0 %v150, 127
  %v153 = vpop.permute.xlu0 %152
  %v155 = vsub.f32 %v107, %v153
  %v156 = vsel %vm21, %v145, %v155
  %v157 = vlaneseq
  %v158 = vshrl.u32 %v157, 7
  %v159 = vsub.s32 1, %v158
  %v160 = vrot.slane %v127, %v159
  %v161 = vmul.f32 %v131, %v160
  %v162 = vsub.f32 %v114, %v161
  %v163 = vsel %vm140, %v160, %v162
  %v164 = vrcp.pop %v141
  %v165 = vmul.f32 1.0, %v164
  %167 = vset.pattern.permute.xlu0 2
  %168 = vperm.xlu0 %167, %v165
  %v169 = vpop.permute.xlu0 %168
  %v171 = vmul.f32 %v141, %v169
  %172 = vrot.lane.b32.xlu0 %v165, 126
  %v173 = vpop.permute.xlu0 %172
  %v175 = vmul.f32 %v156, %v173
  %v176 = vmul.f32 %v163, %v169
  %vm177 = vcmp.eq.s32.totalorder %v15, 2
  %179 = vset.pattern.permute.xlu0 2
  %180 = vperm.xlu0 %179, %v141
  %v181 = vpop.permute.xlu0 %180
  %v183 = vlaneseq
  %v184 = vshrl.u32 %v183, 7
  %v185 = vsub.s32 2, %v184
  %v186 = vrot.slane %v171, %v185
  %v187 = vmul.f32 %v181, %v186
  %v188 = vsub.f32 %v141, %v187
  %v189 = vsel %vm177, 1, 0
  %vm190 = vcmp.eq.s32.totalorder %v189, 1
  %v191 = vsel %vm190, %v186, %v188
  %v192 = vlaneseq
  %v193 = vshrl.u32 %v192, 7
  %v194 = vsub.s32 2, %v193
  %v195 = vrot.slane %v175, %v194
  %197 = vrot.lane.b32.xlu0 %v195, 2
  %v198 = vpop.permute.xlu0 %197
  %v200 = vmul.f32 %v141, %v198
  %202 = vrot.lane.b32.xlu0 %v200, 126
  %v203 = vpop.permute.xlu0 %202
  %v205 = vsub.f32 %v156, %v203
  %v206 = vsel %vm177, %v195, %v205
  %v207 = vlaneseq
  %v208 = vshrl.u32 %v207, 7
  %v209 = vsub.s32 2, %v208
  %v210 = vrot.slane %v176, %v209
  %v211 = vmul.f32 %v181, %v210
  %v212 = vsub.f32 %v163, %v211
  %v213 = vsel %vm190, %v210, %v212
  %v214 = vrcp.pop %v191
  %v215 = vmul.f32 1.0, %v214
  %217 = vset.pattern.permute.xlu0 3
  %218 = vperm.xlu0 %217, %v215
  %v219 = vpop.permute.xlu0 %218
  %v221 = vmul.f32 %v191, %v219
  %222 = vrot.lane.b32.xlu0 %v215, 125
  %v223 = vpop.permute.xlu0 %222
  %v225 = vmul.f32 %v206, %v223
  %v226 = vmul.f32 %v213, %v219
  %vm227 = vcmp.eq.s32.totalorder %v15, 3
  %229 = vset.pattern.permute.xlu0 3
  %230 = vperm.xlu0 %229, %v191
  %v231 = vpop.permute.xlu0 %230
  %v233 = vlaneseq
  %v234 = vshrl.u32 %v233, 7
  %v235 = vsub.s32 3, %v234
  %v236 = vrot.slane %v221, %v235
  %v237 = vmul.f32 %v231, %v236
  %v238 = vsub.f32 %v191, %v237
  %v239 = vsel %vm227, 1, 0
  %vm240 = vcmp.eq.s32.totalorder %v239, 1
  %v241 = vsel %vm240, %v236, %v238
  %v242 = vlaneseq
  %v243 = vshrl.u32 %v242, 7
  %v244 = vsub.s32 3, %v243
  %v245 = vrot.slane %v225, %v244
  %247 = vrot.lane.b32.xlu0 %v245, 3
  %v248 = vpop.permute.xlu0 %247
  %v250 = vmul.f32 %v191, %v248
  %252 = vrot.lane.b32.xlu0 %v250, 125
  %v253 = vpop.permute.xlu0 %252
  %v255 = vsub.f32 %v206, %v253
  %v256 = vsel %vm227, %v245, %v255
  %v257 = vlaneseq
  %v258 = vshrl.u32 %v257, 7
  %v259 = vsub.s32 3, %v258
  %v260 = vrot.slane %v226, %v259
  %v261 = vmul.f32 %v231, %v260
  %v262 = vsub.f32 %v213, %v261
  %v263 = vsel %vm240, %v260, %v262
  %v264 = vrcp.pop %v241
  %v265 = vmul.f32 1.0, %v264
  %267 = vset.pattern.permute.xlu0 4
  %268 = vperm.xlu0 %267, %v265
  %v269 = vpop.permute.xlu0 %268
  %v271 = vmul.f32 %v241, %v269
  %272 = vrot.lane.b32.xlu0 %v265, 124
  %v273 = vpop.permute.xlu0 %272
  %v275 = vmul.f32 %v256, %v273
  %v276 = vmul.f32 %v263, %v269
  %vm277 = vcmp.eq.s32.totalorder %v15, 4
  %279 = vset.pattern.permute.xlu0 4
  %280 = vperm.xlu0 %279, %v241
  %v281 = vpop.permute.xlu0 %280
  %v283 = vlaneseq
  %v284 = vshrl.u32 %v283, 7
  %v285 = vsub.s32 4, %v284
  %v286 = vrot.slane %v271, %v285
  %v287 = vmul.f32 %v281, %v286
  %v288 = vsub.f32 %v241, %v287
  %v289 = vsel %vm277, 1, 0
  %vm290 = vcmp.eq.s32.totalorder %v289, 1
  %v291 = vsel %vm290, %v286, %v288
  %v292 = vlaneseq
  %v293 = vshrl.u32 %v292, 7
  %v294 = vsub.s32 4, %v293
  %v295 = vrot.slane %v275, %v294
  %297 = vrot.lane.b32.xlu0 %v295, 4
  %v298 = vpop.permute.xlu0 %297
  %v300 = vmul.f32 %v241, %v298
  %302 = vrot.lane.b32.xlu0 %v300, 124
  %v303 = vpop.permute.xlu0 %302
  %v305 = vsub.f32 %v256, %v303
  %v306 = vsel %vm277, %v295, %v305
  %v307 = vlaneseq
  %v308 = vshrl.u32 %v307, 7
  %v309 = vsub.s32 4, %v308
  %v310 = vrot.slane %v276, %v309
  %v311 = vmul.f32 %v281, %v310
  %v312 = vsub.f32 %v263, %v311
  %v313 = vsel %vm290, %v310, %v312
  %v314 = vrcp.pop %v291
  %v315 = vmul.f32 1.0, %v314
  %317 = vset.pattern.permute.xlu0 5
  %318 = vperm.xlu0 %317, %v315
  %v319 = vpop.permute.xlu0 %318
  %v321 = vmul.f32 %v291, %v319
  %322 = vrot.lane.b32.xlu0 %v315, 123
  %v323 = vpop.permute.xlu0 %322
  %v325 = vmul.f32 %v306, %v323
  %v326 = vmul.f32 %v313, %v319
  %vm327 = vcmp.eq.s32.totalorder %v15, 5
  %329 = vset.pattern.permute.xlu0 5
  %330 = vperm.xlu0 %329, %v291
  %v331 = vpop.permute.xlu0 %330
  %v333 = vlaneseq
  %v334 = vshrl.u32 %v333, 7
  %v335 = vsub.s32 5, %v334
  %v336 = vrot.slane %v321, %v335
  %v337 = vmul.f32 %v331, %v336
  %v338 = vsub.f32 %v291, %v337
  %v339 = vsel %vm327, 1, 0
  %vm340 = vcmp.eq.s32.totalorder %v339, 1
  %v341 = vsel %vm340, %v336, %v338
  %v342 = vlaneseq
  %v343 = vshrl.u32 %v342, 7
  %v344 = vsub.s32 5, %v343
  %v345 = vrot.slane %v325, %v344
  %347 = vrot.lane.b32.xlu0 %v345, 5
  %v348 = vpop.permute.xlu0 %347
  %v350 = vmul.f32 %v291, %v348
  %352 = vrot.lane.b32.xlu0 %v350, 123
  %v353 = vpop.permute.xlu0 %352
  %v355 = vsub.f32 %v306, %v353
  %v356 = vsel %vm327, %v345, %v355
  %v357 = vlaneseq
  %v358 = vshrl.u32 %v357, 7
  %v359 = vsub.s32 5, %v358
  %v360 = vrot.slane %v326, %v359
  %v361 = vmul.f32 %v331, %v360
  %v362 = vsub.f32 %v313, %v361
  %v363 = vsel %vm340, %v360, %v362
  %v364 = vrcp.pop %v341
  %v365 = vmul.f32 1.0, %v364
  %367 = vset.pattern.permute.xlu0 6
  %368 = vperm.xlu0 %367, %v365
  %v369 = vpop.permute.xlu0 %368
  %v371 = vmul.f32 %v341, %v369
  %372 = vrot.lane.b32.xlu0 %v365, 122
  %v373 = vpop.permute.xlu0 %372
  %v375 = vmul.f32 %v356, %v373
  %v376 = vmul.f32 %v363, %v369
  %vm377 = vcmp.eq.s32.totalorder %v15, 6
  %379 = vset.pattern.permute.xlu0 6
  %380 = vperm.xlu0 %379, %v341
  %v381 = vpop.permute.xlu0 %380
  %v383 = vlaneseq
  %v384 = vshrl.u32 %v383, 7
  %v385 = vsub.s32 6, %v384
  %v386 = vrot.slane %v371, %v385
  %v387 = vmul.f32 %v381, %v386
  %v388 = vsub.f32 %v341, %v387
  %v389 = vsel %vm377, 1, 0
  %vm390 = vcmp.eq.s32.totalorder %v389, 1
  %v391 = vsel %vm390, %v386, %v388
  %v392 = vlaneseq
  %v393 = vshrl.u32 %v392, 7
  %v394 = vsub.s32 6, %v393
  %v395 = vrot.slane %v375, %v394
  %397 = vrot.lane.b32.xlu0 %v395, 6
  %v398 = vpop.permute.xlu0 %397
  %v400 = vmul.f32 %v341, %v398
  %402 = vrot.lane.b32.xlu0 %v400, 122
  %v403 = vpop.permute.xlu0 %402
  %v405 = vsub.f32 %v356, %v403
  %v406 = vsel %vm377, %v395, %v405
  %v407 = vlaneseq
  %v408 = vshrl.u32 %v407, 7
  %v409 = vsub.s32 6, %v408
  %v410 = vrot.slane %v376, %v409
  %v411 = vmul.f32 %v381, %v410
  %v412 = vsub.f32 %v363, %v411
  %v413 = vsel %vm390, %v410, %v412
  %v414 = vrcp.pop %v391
  %v415 = vmul.f32 1.0, %v414
  %417 = vrot.lane.b32.xlu0 %v415, 121
  %v418 = vpop.permute.xlu0 %417
  %v420 = vmul.f32 %v406, %v418
  %421 = vset.pattern.permute.xlu0 7
  %422 = vperm.xlu0 %421, %v415
  %v423 = vpop.permute.xlu0 %422
  %v425 = vmul.f32 %v413, %v423
  %vm426 = vcmp.eq.s32.totalorder %v15, 7
  %v427 = vlaneseq
  %v428 = vshrl.u32 %v427, 7
  %v429 = vsub.s32 7, %v428
  %v430 = vrot.slane %v420, %v429
  %432 = vrot.lane.b32.xlu0 %v430, 7
  %v433 = vpop.permute.xlu0 %432
  %v435 = vmul.f32 %v391, %v433
  %437 = vrot.lane.b32.xlu0 %v435, 121
  %v438 = vpop.permute.xlu0 %437
  %v440 = vsub.f32 %v406, %v438
  %v441 = vsel %vm426, %v430, %v440
  %443 = vset.pattern.permute.xlu0 7
  %444 = vperm.xlu0 %443, %v391
  %v445 = vpop.permute.xlu0 %444
  %v447 = vlaneseq
  %v448 = vshrl.u32 %v447, 7
  %v449 = vsub.s32 7, %v448
  %v450 = vrot.slane %v425, %v449
  %v451 = vmul.f32 %v445, %v450
  %v452 = vsub.f32 %v413, %v451
  %v453 = vsel %vm426, 1, 0
  %vm454 = vcmp.eq.s32.totalorder %v453, 1
  %v455 = vsel %vm454, %v450, %v452
  %457 = vset.pattern.permute.xlu0 0
  %458 = vperm.xlu0 %457, %v441
  %v459 = vpop.permute.xlu0 %458
  %v461 = vmul.f32 %v459, %v75
  %vm462 = vcmask 130048
  %v463 = vsel %vm462, %v461, 0.0
  %v464 = vrot.slane %v463, 4
  %v465 = vadd.f32 %v463, %v464
  %v466 = vrot.slane %v465, 2
  %v467 = vadd.f32 %v465, %v466
  %v468 = vrot.slane %v467, 1
  %v469 = vadd.f32 %v467, %v468
  %v470 = vmul.f32 %v455, %v75
  %v471 = vsel %vm462, %v470, 0.0
  %v472 = vrot.slane %v471, 4
  %v473 = vadd.f32 %v471, %v472
  %v474 = vrot.slane %v473, 2
  %v475 = vadd.f32 %v473, %v474
  %v476 = vrot.slane %v475, 1
  %v477 = vadd.f32 %v475, %v476
  %v478 = vsub.f32 1.1, %v477
  %v479 = vmax.f32 %v478, 1e-12
  %v480 = vrsqrt.pop %v479
  %v481 = vmul.f32 %v479, %v480
  %vm482 = vcmp.eq.f32.partialorder %v479, inf
  %v483 = vsel %vm482, %v479, %v481
  %vm484 = vcmp.eq.f32.partialorder %v479, 0.0
  %v485 = vand.u32 %v479, 2147483648
  %v486 = vsel %vm484, %v485, %v483
  %v487 = vmul.f32 %v486, 2.0
  %v488 = vmul.f32 %v23, %v487
  %v489 = vadd.f32 %v469, %v488
  %vm490 = vcmask 124928
  %491 = vst.msk [vmem:[%s3] sm:$0x7] %vm490, %v489
  %s492 = scalar_lea.vmem %s0, 8
  %v493 = vld [vmem:[%s492] sm:$0xff]
  %s494 = scalar_lea.vmem %s1, 4
  %v495 = vld [vmem:[%s494] sm:$0xf]
  %s496 = scalar_lea.vmem %s2, 8
  %v497 = vld [vmem:[%s496] sm:$0xff]
  %499 = vset.pattern.permute.xlu0 0
  %500 = vperm.xlu0 %499, %v493
  %v501 = vpop.permute.xlu0 %500
  %v503 = vlaneseq
  %v504 = vshrl.u32 %v503, 7
  %v505 = vsub.s32 0, %v504
  %v506 = vrot.slane %v495, %v505
  %v507 = vsub.f32 %v501, %v506
  %v508 = vmul.f32 %v507, %v507
  %v509 = vadd.f32 %v508, 0.0
  %510 = vset.pattern.permute.xlu0 1
  %511 = vperm.xlu0 %510, %v493
  %v512 = vpop.permute.xlu0 %511
  %v514 = vlaneseq
  %v515 = vshrl.u32 %v514, 7
  %v516 = vsub.s32 1, %v515
  %v517 = vrot.slane %v495, %v516
  %v518 = vsub.f32 %v512, %v517
  %v519 = vmul.f32 %v518, %v518
  %v520 = vadd.f32 %v509, %v519
  %521 = vset.pattern.permute.xlu0 2
  %522 = vperm.xlu0 %521, %v493
  %v523 = vpop.permute.xlu0 %522
  %v525 = vlaneseq
  %v526 = vshrl.u32 %v525, 7
  %v527 = vsub.s32 2, %v526
  %v528 = vrot.slane %v495, %v527
  %v529 = vsub.f32 %v523, %v528
  %v530 = vmul.f32 %v529, %v529
  %v531 = vadd.f32 %v520, %v530
  %532 = vset.pattern.permute.xlu0 3
  %533 = vperm.xlu0 %532, %v493
  %v534 = vpop.permute.xlu0 %533
  %v536 = vlaneseq
  %v537 = vshrl.u32 %v536, 7
  %v538 = vsub.s32 3, %v537
  %v539 = vrot.slane %v495, %v538
  %v540 = vsub.f32 %v534, %v539
  %v541 = vmul.f32 %v540, %v540
  %v542 = vadd.f32 %v531, %v541
  %v543 = vsub.f32 0.0, %v542
  %v544 = vmul.f32 %v543, 0.5
  %v545 = vmul.f32 %v544, 1.442695
  %v546 = vpow.pop %v545
  %v547 = vadd.f32 %v546, %v19
  %v548 = vrcp.pop %v547
  %v549 = vmul.f32 1.0, %v548
  %551 = vset.pattern.permute.xlu0 0
  %552 = vperm.xlu0 %551, %v549
  %v553 = vpop.permute.xlu0 %552
  %v555 = vmul.f32 %v547, %v553
  %v556 = vmul.f32 %v497, %v549
  %v557 = vmul.f32 %v546, %v553
  %559 = vset.pattern.permute.xlu0 0
  %560 = vperm.xlu0 %559, %v547
  %v561 = vpop.permute.xlu0 %560
  %v563 = vlaneseq
  %v564 = vshrl.u32 %v563, 7
  %v565 = vsub.s32 0, %v564
  %v566 = vrot.slane %v555, %v565
  %v567 = vmul.f32 %v561, %v566
  %v568 = vsub.f32 %v547, %v567
  %v569 = vsel %vm99, %v566, %v568
  %v570 = vlaneseq
  %v571 = vshrl.u32 %v570, 7
  %v572 = vsub.s32 0, %v571
  %v573 = vrot.slane %v556, %v572
  %v574 = vmul.f32 %v547, %v573
  %v575 = vsub.f32 %v497, %v574
  %v576 = vsel %vm20, %v573, %v575
  %v577 = vlaneseq
  %v578 = vshrl.u32 %v577, 7
  %v579 = vsub.s32 0, %v578
  %v580 = vrot.slane %v557, %v579
  %v581 = vmul.f32 %v561, %v580
  %v582 = vsub.f32 %v546, %v581
  %v583 = vsel %vm99, %v580, %v582
  %v584 = vrcp.pop %v569
  %v585 = vmul.f32 1.0, %v584
  %587 = vset.pattern.permute.xlu0 1
  %588 = vperm.xlu0 %587, %v585
  %v589 = vpop.permute.xlu0 %588
  %v591 = vmul.f32 %v569, %v589
  %592 = vrot.lane.b32.xlu0 %v585, 127
  %v593 = vpop.permute.xlu0 %592
  %v595 = vmul.f32 %v576, %v593
  %v596 = vmul.f32 %v583, %v589
  %598 = vset.pattern.permute.xlu0 1
  %599 = vperm.xlu0 %598, %v569
  %v600 = vpop.permute.xlu0 %599
  %v602 = vlaneseq
  %v603 = vshrl.u32 %v602, 7
  %v604 = vsub.s32 1, %v603
  %v605 = vrot.slane %v591, %v604
  %v606 = vmul.f32 %v600, %v605
  %v607 = vsub.f32 %v569, %v606
  %v608 = vsel %vm140, %v605, %v607
  %v609 = vlaneseq
  %v610 = vshrl.u32 %v609, 7
  %v611 = vsub.s32 1, %v610
  %v612 = vrot.slane %v595, %v611
  %614 = vrot.lane.b32.xlu0 %v612, 1
  %v615 = vpop.permute.xlu0 %614
  %v617 = vmul.f32 %v569, %v615
  %619 = vrot.lane.b32.xlu0 %v617, 127
  %v620 = vpop.permute.xlu0 %619
  %v622 = vsub.f32 %v576, %v620
  %v623 = vsel %vm21, %v612, %v622
  %v624 = vlaneseq
  %v625 = vshrl.u32 %v624, 7
  %v626 = vsub.s32 1, %v625
  %v627 = vrot.slane %v596, %v626
  %v628 = vmul.f32 %v600, %v627
  %v629 = vsub.f32 %v583, %v628
  %v630 = vsel %vm140, %v627, %v629
  %v631 = vrcp.pop %v608
  %v632 = vmul.f32 1.0, %v631
  %634 = vset.pattern.permute.xlu0 2
  %635 = vperm.xlu0 %634, %v632
  %v636 = vpop.permute.xlu0 %635
  %v638 = vmul.f32 %v608, %v636
  %639 = vrot.lane.b32.xlu0 %v632, 126
  %v640 = vpop.permute.xlu0 %639
  %v642 = vmul.f32 %v623, %v640
  %v643 = vmul.f32 %v630, %v636
  %645 = vset.pattern.permute.xlu0 2
  %646 = vperm.xlu0 %645, %v608
  %v647 = vpop.permute.xlu0 %646
  %v649 = vlaneseq
  %v650 = vshrl.u32 %v649, 7
  %v651 = vsub.s32 2, %v650
  %v652 = vrot.slane %v638, %v651
  %v653 = vmul.f32 %v647, %v652
  %v654 = vsub.f32 %v608, %v653
  %v655 = vsel %vm190, %v652, %v654
  %v656 = vlaneseq
  %v657 = vshrl.u32 %v656, 7
  %v658 = vsub.s32 2, %v657
  %v659 = vrot.slane %v642, %v658
  %661 = vrot.lane.b32.xlu0 %v659, 2
  %v662 = vpop.permute.xlu0 %661
  %v664 = vmul.f32 %v608, %v662
  %666 = vrot.lane.b32.xlu0 %v664, 126
  %v667 = vpop.permute.xlu0 %666
  %v669 = vsub.f32 %v623, %v667
  %v670 = vsel %vm177, %v659, %v669
  %v671 = vlaneseq
  %v672 = vshrl.u32 %v671, 7
  %v673 = vsub.s32 2, %v672
  %v674 = vrot.slane %v643, %v673
  %v675 = vmul.f32 %v647, %v674
  %v676 = vsub.f32 %v630, %v675
  %v677 = vsel %vm190, %v674, %v676
  %v678 = vrcp.pop %v655
  %v679 = vmul.f32 1.0, %v678
  %681 = vset.pattern.permute.xlu0 3
  %682 = vperm.xlu0 %681, %v679
  %v683 = vpop.permute.xlu0 %682
  %v685 = vmul.f32 %v655, %v683
  %686 = vrot.lane.b32.xlu0 %v679, 125
  %v687 = vpop.permute.xlu0 %686
  %v689 = vmul.f32 %v670, %v687
  %v690 = vmul.f32 %v677, %v683
  %692 = vset.pattern.permute.xlu0 3
  %693 = vperm.xlu0 %692, %v655
  %v694 = vpop.permute.xlu0 %693
  %v696 = vlaneseq
  %v697 = vshrl.u32 %v696, 7
  %v698 = vsub.s32 3, %v697
  %v699 = vrot.slane %v685, %v698
  %v700 = vmul.f32 %v694, %v699
  %v701 = vsub.f32 %v655, %v700
  %v702 = vsel %vm240, %v699, %v701
  %v703 = vlaneseq
  %v704 = vshrl.u32 %v703, 7
  %v705 = vsub.s32 3, %v704
  %v706 = vrot.slane %v689, %v705
  %708 = vrot.lane.b32.xlu0 %v706, 3
  %v709 = vpop.permute.xlu0 %708
  %v711 = vmul.f32 %v655, %v709
  %713 = vrot.lane.b32.xlu0 %v711, 125
  %v714 = vpop.permute.xlu0 %713
  %v716 = vsub.f32 %v670, %v714
  %v717 = vsel %vm227, %v706, %v716
  %v718 = vlaneseq
  %v719 = vshrl.u32 %v718, 7
  %v720 = vsub.s32 3, %v719
  %v721 = vrot.slane %v690, %v720
  %v722 = vmul.f32 %v694, %v721
  %v723 = vsub.f32 %v677, %v722
  %v724 = vsel %vm240, %v721, %v723
  %v725 = vrcp.pop %v702
  %v726 = vmul.f32 1.0, %v725
  %728 = vset.pattern.permute.xlu0 4
  %729 = vperm.xlu0 %728, %v726
  %v730 = vpop.permute.xlu0 %729
  %v732 = vmul.f32 %v702, %v730
  %733 = vrot.lane.b32.xlu0 %v726, 124
  %v734 = vpop.permute.xlu0 %733
  %v736 = vmul.f32 %v717, %v734
  %v737 = vmul.f32 %v724, %v730
  %739 = vset.pattern.permute.xlu0 4
  %740 = vperm.xlu0 %739, %v702
  %v741 = vpop.permute.xlu0 %740
  %v743 = vlaneseq
  %v744 = vshrl.u32 %v743, 7
  %v745 = vsub.s32 4, %v744
  %v746 = vrot.slane %v732, %v745
  %v747 = vmul.f32 %v741, %v746
  %v748 = vsub.f32 %v702, %v747
  %v749 = vsel %vm290, %v746, %v748
  %v750 = vlaneseq
  %v751 = vshrl.u32 %v750, 7
  %v752 = vsub.s32 4, %v751
  %v753 = vrot.slane %v736, %v752
  %755 = vrot.lane.b32.xlu0 %v753, 4
  %v756 = vpop.permute.xlu0 %755
  %v758 = vmul.f32 %v702, %v756
  %760 = vrot.lane.b32.xlu0 %v758, 124
  %v761 = vpop.permute.xlu0 %760
  %v763 = vsub.f32 %v717, %v761
  %v764 = vsel %vm277, %v753, %v763
  %v765 = vlaneseq
  %v766 = vshrl.u32 %v765, 7
  %v767 = vsub.s32 4, %v766
  %v768 = vrot.slane %v737, %v767
  %v769 = vmul.f32 %v741, %v768
  %v770 = vsub.f32 %v724, %v769
  %v771 = vsel %vm290, %v768, %v770
  %v772 = vrcp.pop %v749
  %v773 = vmul.f32 1.0, %v772
  %775 = vset.pattern.permute.xlu0 5
  %776 = vperm.xlu0 %775, %v773
  %v777 = vpop.permute.xlu0 %776
  %v779 = vmul.f32 %v749, %v777
  %780 = vrot.lane.b32.xlu0 %v773, 123
  %v781 = vpop.permute.xlu0 %780
  %v783 = vmul.f32 %v764, %v781
  %v784 = vmul.f32 %v771, %v777
  %786 = vset.pattern.permute.xlu0 5
  %787 = vperm.xlu0 %786, %v749
  %v788 = vpop.permute.xlu0 %787
  %v790 = vlaneseq
  %v791 = vshrl.u32 %v790, 7
  %v792 = vsub.s32 5, %v791
  %v793 = vrot.slane %v779, %v792
  %v794 = vmul.f32 %v788, %v793
  %v795 = vsub.f32 %v749, %v794
  %v796 = vsel %vm340, %v793, %v795
  %v797 = vlaneseq
  %v798 = vshrl.u32 %v797, 7
  %v799 = vsub.s32 5, %v798
  %v800 = vrot.slane %v783, %v799
  %802 = vrot.lane.b32.xlu0 %v800, 5
  %v803 = vpop.permute.xlu0 %802
  %v805 = vmul.f32 %v749, %v803
  %807 = vrot.lane.b32.xlu0 %v805, 123
  %v808 = vpop.permute.xlu0 %807
  %v810 = vsub.f32 %v764, %v808
  %v811 = vsel %vm327, %v800, %v810
  %v812 = vlaneseq
  %v813 = vshrl.u32 %v812, 7
  %v814 = vsub.s32 5, %v813
  %v815 = vrot.slane %v784, %v814
  %v816 = vmul.f32 %v788, %v815
  %v817 = vsub.f32 %v771, %v816
  %v818 = vsel %vm340, %v815, %v817
  %v819 = vrcp.pop %v796
  %v820 = vmul.f32 1.0, %v819
  %822 = vset.pattern.permute.xlu0 6
  %823 = vperm.xlu0 %822, %v820
  %v824 = vpop.permute.xlu0 %823
  %v826 = vmul.f32 %v796, %v824
  %827 = vrot.lane.b32.xlu0 %v820, 122
  %v828 = vpop.permute.xlu0 %827
  %v830 = vmul.f32 %v811, %v828
  %v831 = vmul.f32 %v818, %v824
  %833 = vset.pattern.permute.xlu0 6
  %834 = vperm.xlu0 %833, %v796
  %v835 = vpop.permute.xlu0 %834
  %v837 = vlaneseq
  %v838 = vshrl.u32 %v837, 7
  %v839 = vsub.s32 6, %v838
  %v840 = vrot.slane %v826, %v839
  %v841 = vmul.f32 %v835, %v840
  %v842 = vsub.f32 %v796, %v841
  %v843 = vsel %vm390, %v840, %v842
  %v844 = vlaneseq
  %v845 = vshrl.u32 %v844, 7
  %v846 = vsub.s32 6, %v845
  %v847 = vrot.slane %v830, %v846
  %849 = vrot.lane.b32.xlu0 %v847, 6
  %v850 = vpop.permute.xlu0 %849
  %v852 = vmul.f32 %v796, %v850
  %854 = vrot.lane.b32.xlu0 %v852, 122
  %v855 = vpop.permute.xlu0 %854
  %v857 = vsub.f32 %v811, %v855
  %v858 = vsel %vm377, %v847, %v857
  %v859 = vlaneseq
  %v860 = vshrl.u32 %v859, 7
  %v861 = vsub.s32 6, %v860
  %v862 = vrot.slane %v831, %v861
  %v863 = vmul.f32 %v835, %v862
  %v864 = vsub.f32 %v818, %v863
  %v865 = vsel %vm390, %v862, %v864
  %v866 = vrcp.pop %v843
  %v867 = vmul.f32 1.0, %v866
  %869 = vrot.lane.b32.xlu0 %v867, 121
  %v870 = vpop.permute.xlu0 %869
  %v872 = vmul.f32 %v858, %v870
  %873 = vset.pattern.permute.xlu0 7
  %874 = vperm.xlu0 %873, %v867
  %v875 = vpop.permute.xlu0 %874
  %v877 = vmul.f32 %v865, %v875
  %v878 = vlaneseq
  %v879 = vshrl.u32 %v878, 7
  %v880 = vsub.s32 7, %v879
  %v881 = vrot.slane %v872, %v880
  %883 = vrot.lane.b32.xlu0 %v881, 7
  %v884 = vpop.permute.xlu0 %883
  %v886 = vmul.f32 %v843, %v884
  %888 = vrot.lane.b32.xlu0 %v886, 121
  %v889 = vpop.permute.xlu0 %888
  %v891 = vsub.f32 %v858, %v889
  %v892 = vsel %vm426, %v881, %v891
  %894 = vset.pattern.permute.xlu0 7
  %895 = vperm.xlu0 %894, %v843
  %v896 = vpop.permute.xlu0 %895
  %v898 = vlaneseq
  %v899 = vshrl.u32 %v898, 7
  %v900 = vsub.s32 7, %v899
  %v901 = vrot.slane %v877, %v900
  %v902 = vmul.f32 %v896, %v901
  %v903 = vsub.f32 %v865, %v902
  %v904 = vsel %vm454, %v901, %v903
  %906 = vset.pattern.permute.xlu0 0
  %907 = vperm.xlu0 %906, %v892
  %v908 = vpop.permute.xlu0 %907
  %v910 = vmul.f32 %v908, %v546
  %v911 = vsel %vm462, %v910, 0.0
  %v912 = vrot.slane %v911, 4
  %v913 = vadd.f32 %v911, %v912
  %v914 = vrot.slane %v913, 2
  %v915 = vadd.f32 %v913, %v914
  %v916 = vrot.slane %v915, 1
  %v917 = vadd.f32 %v915, %v916
  %v918 = vmul.f32 %v904, %v546
  %v919 = vsel %vm462, %v918, 0.0
  %v920 = vrot.slane %v919, 4
  %v921 = vadd.f32 %v919, %v920
  %v922 = vrot.slane %v921, 2
  %v923 = vadd.f32 %v921, %v922
  %v924 = vrot.slane %v923, 1
  %v925 = vadd.f32 %v923, %v924
  %v926 = vsub.f32 1.1, %v925
  %v927 = vmax.f32 %v926, 1e-12
  %v928 = vrsqrt.pop %v927
  %v929 = vmul.f32 %v927, %v928
  %vm930 = vcmp.eq.f32.partialorder %v927, inf
  %v931 = vsel %vm930, %v927, %v929
  %vm932 = vcmp.eq.f32.partialorder %v927, 0.0
  %v933 = vand.u32 %v927, 2147483648
  %v934 = vsel %vm932, %v933, %v931
  %v935 = vmul.f32 %v934, 2.0
  %v936 = vmul.f32 %v23, %v935
  %v937 = vadd.f32 %v917, %v936
  %s938 = scalar_lea.vmem %s3, 4
  %939 = vst.msk [vmem:[%s938] sm:$0x7] %vm490, %v937
  // Predicated region
  $region14: #{regression_encoder_gp_forward.1} parent=0 // pred_check
    _
  $region15: #{regression_encoder_gp_forward.1} parent=0 // pred_check_branch
    %941 = sbr.rel (0) target = $region17
  $region16: #{regression_encoder_gp_forward.1} parent=0 // pred_region
    _
  $region17: #{regression_encoder_gp_forward.1} parent=0 // pred_fallthru
    _
  // Predicated region
  $region18: #{regression_encoder_gp_forward.1} parent=0 // pred_check
    _
  $region19: #{regression_encoder_gp_forward.1} parent=0 // pred_check_branch
    %943 = sbr.rel (0) target = $region21
  $region20: #{regression_encoder_gp_forward.1} parent=0 // pred_region
    _
  $region21: #{regression_encoder_gp_forward.1} parent=0 // pred_fallthru
    _

</llo_original>
